<compile_context>
chip_gen: v6e
topology: v6e:2x2x1
jax: 0.10.0
libtpu: 0.0.40
codegen_flags: <defaults>
</compile_context>

<pallas_src>
import numpy as np
import jax
import jax.numpy as jnp
from jax import lax
from jax.experimental import pallas as pl
from jax.experimental.pallas import tpu as pltpu

# ----------------------------- model dims -----------------------------------
NODE_FEAT = 2      # node feature dim => e_feat has 2*NODE_FEAT = 4 channels
N_HID     = 32     # n_hid == edge_dim
N_OUT     = 8
B         = 2      # graphs in the batch

PACK_ORDER = ["w1", "b1", "w23a", "b3p", "w3b", "w45", "b45", "w6m",
              "wm1g", "bm1p", "wm2", "bm2",
              "wf1", "bf1", "wf2", "bf2", "wf3", "bf3", "wg", "bg"]


def _relu(x):
    return jnp.maximum(x, 0.0)


# --------------------------- parameter init ---------------------------------
def init_linear(key, fan_in, fan_out):
    k1, k2 = jax.random.split(key)
    lim = 1.0 / np.sqrt(fan_in)
    w = jax.random.uniform(k1, (fan_in, fan_out), jnp.float32, -lim, lim)
    b = jax.random.uniform(k2, (1, fan_out), jnp.float32, -lim, lim)
    return w, b


def make_params(key):
    ks = jax.random.split(key, 12)
    p = {}
    # SCB_encoder: Linear(4,64) -> ReLU -> Linear(64,64)
    p["w1"], p["b1"] = init_linear(ks[0], 4, 64)
    p["w2"], p["b2"] = init_linear(ks[1], 64, 64)
    # SCB_encoder2: Linear(64+4,128) -> ReLU -> Linear(128,128); split W3 into halves
    w3, p["b3"] = init_linear(ks[2], 64 + 4, 128)
    p["w3a"], p["w3b"] = w3[:64], w3[64:]
    p["w4"], p["b4"] = init_linear(ks[3], 128, 128)
    # SCB_encoder4: Linear(128,n_hid) -> ReLU -> Linear(n_hid,n_hid)
    p["w5"], p["b5"] = init_linear(ks[4], 128, N_HID)
    p["w6"], p["b6"] = init_linear(ks[5], N_HID, N_HID)
    # SCB_encoder_feature: Linear(20,n_hid) -> ReLU -> Linear -> ReLU -> Linear(n_hid,n_out)
    p["wf1"], p["bf1"] = init_linear(ks[6], 20, N_HID)
    p["wf2"], p["bf2"] = init_linear(ks[7], N_HID, N_HID)
    p["wf3"], p["bf3"] = init_linear(ks[8], N_HID, N_OUT)
    # final_mlp: Linear(2*n_hid,n_hid) -> ReLU -> Linear(n_hid,n_out)
    p["wm1"], p["bm1"] = init_linear(ks[9], 2 * N_HID, N_HID)
    p["wm2"], p["bm2"] = init_linear(ks[10], N_HID, N_OUT)
    # stand-in GNN projection (see TODO below)
    p["wg"], p["bg"] = init_linear(ks[11], NODE_FEAT, N_HID)
    return p


# ---------------------- host-side glue (mirrors torch) ----------------------
def pad_SCB_np(x, edgelen, betalen):
    xsize = x.shape
    mask = np.zeros(edgelen, dtype=bool)
    if xsize[1] < edgelen or xsize[0] < betalen:
        new_x = np.zeros((betalen, edgelen, xsize[2]), dtype=x.dtype)
        new_x[:xsize[0], :xsize[1], :] = x
        mask[:xsize[1]] = True
        x = new_x
    else:
        mask[:] = True
    return x[None], mask


def extract_SCB_feature_np(pad_emb):
    pe = pad_emb.copy()
    m = pe == 0
    pe[m] = np.inf
    pe_min = pe.min(axis=2).min(axis=2)
    pe[m] = -np.inf
    pe_max = pe.max(axis=2).max(axis=2)
    return np.concatenate([pe_min[pe_min != np.inf], pe_max[pe_max != -np.inf]])


# ------------------------ weight slab packing --------------------------------
def pack_weights(p, beta, edges):
    """Fuse consecutive linear layers host-side and pack everything into one
    lane-128, sublane-8-aligned f32 slab. All fusions are algebraically exact
    (no ReLU sits between the fused pairs)."""
    wm1g = p["wm1"][:N_HID]                      # gnn half of final_mlp.0
    wm1l = p["wm1"][N_HID:]                      # L1-sum half of final_mlp.0
    t = {
        "w1": p["w1"], "b1": p["b1"],
        # SCB_encoder.2 fused into SCB_encoder2.0 (top half)
        "w23a": p["w2"] @ p["w3a"],
        "b3p":  p["b3"] + p["b2"] @ p["w3a"],
        "w3b":  p["w3b"],
        # SCB_encoder2.2 fused into SCB_encoder4.0; beta-sum applied before it,
        # so BETA*b4 is folded into the bias (exact: all BETA rows are summed)
        "w45":  p["w4"] @ p["w5"],
        "b45":  float(beta) * (p["b4"] @ p["w5"]) + p["b5"],
        # SCB_encoder4.2 fused into the L1 half of final_mlp.0; edge-sum applied
        # first, so E*b6 is folded into bm1 (exact: all E padded edges summed)
        "w6m":  p["w6"] @ wm1l,
        "wm1g": wm1g,
        "bm1p": p["bm1"] + float(edges) * (p["b6"] @ wm1l),
        "wm2": p["wm2"], "bm2": p["bm2"],
        "wf1": p["wf1"], "bf1": p["bf1"],
        "wf2": p["wf2"], "bf2": p["bf2"],
        "wf3": p["wf3"], "bf3": p["bf3"],
        "wg":  p["wg"],  "bg":  p["bg"],
    }
    layout = {}
    chunks = []
    off = 0
    for name in PACK_ORDER:
        w = np.asarray(t[name], np.float32)
        r, c = w.shape
        assert c <= 128
        r_pad = -(-r // 8) * 8                   # sublane-align every chunk
        buf = np.zeros((r_pad, 128), np.float32)
        buf[:r, :c] = w
        layout[name] = (off, r_pad, c)           # whole-sublane-tile views
        chunks.append(buf)
        off += r_pad
    return np.concatenate(chunks, axis=0), layout


# ---------------------- activation slab packing -------------------------------
def pack_acts(L1, pooled, feat):
    """Pack L1 (beta-major rows), pooled node features and the SCB feature
    vector into one lane-128 activation slab (2 input DMAs total with the
    weight slab). K channels are zero-padded to sublane-friendly widths."""
    Bn, BETA, E, C = L1.shape
    BBE = Bn * BETA * E
    l1_bm = np.transpose(np.asarray(L1, np.float32), (1, 0, 2, 3)).reshape(BBE, C)
    gnn_off = -(-BBE // 8) * 8
    feat_off = gnn_off + 8
    rows = feat_off + 8
    slab = np.zeros((rows, 128), np.float32)
    slab[:BBE, :C] = l1_bm                                      # 4 -> 8 channel pad
    slab[gnn_off:gnn_off + Bn, :pooled.shape[1]] = pooled       # 2 -> 8 channel pad
    slab[feat_off:feat_off + Bn, :feat.shape[1]] = feat         # 20 -> 24 channel pad
    return slab, {"l1": 0, "pooled": gnn_off, "feat": feat_off}


# ------------------- in-kernel 0/1 selection matrices ------------------------
def _group_sum_mat(rows, cols, group):
    # M[r, c] = 1 iff r*group <= c < (r+1)*group  (sums `group` consecutive rows)
    r = lax.broadcasted_iota(jnp.int32, (rows, cols), 0)
    c = lax.broadcasted_iota(jnp.int32, (rows, cols), 1)
    lo = r * group
    return ((c >= lo) & (c < lo + group)).astype(jnp.float32)


def _group_expand_mat(rows, cols, group):
    # M[r, c] = 1 iff c*group <= r < (c+1)*group  (replicates each input row `group` times)
    r = lax.broadcasted_iota(jnp.int32, (rows, cols), 0)
    c = lax.broadcasted_iota(jnp.int32, (rows, cols), 1)
    lo = c * group
    return ((r >= lo) & (r < lo + group)).astype(jnp.float32)


# ------------------------------ Pallas kernel --------------------------------
def make_kernel(batch, beta, edges, wlayout, alayout):
    BB = batch * beta
    BBE = BB * edges
    BE = batch * edges
    l1_off = alayout["l1"]
    gnn_off = alayout["pooled"]
    feat_off = alayout["feat"]

    def kernel(act_ref, slab_ref, out_ref):
        f32 = jnp.float32
        dot = lambda a, b: jnp.dot(a, b, preferred_element_type=f32)

        def W(name):                              # padded-row, true-column weight view
            off, rp, c = wlayout[name]
            return slab_ref[off:off + rp, 0:c]

        def Wf(name):                             # padded-row, full 128-lane view
            off, rp, _ = wlayout[name]
            return slab_ref[off:off + rp, :]

        def Bv(name):                             # bias row, true columns
            off, _, c = wlayout[name]
            return slab_ref[off:off + 1, 0:c]

        def Bvf(name):                            # bias row, full 128 lanes
            off, _, _ = wlayout[name]
            return slab_ref[off:off + 1, :]

        l1 = act_ref[l1_off:l1_off + BBE, 0:8]            # (BBE, 8), beta-major rows
        pooled = act_ref[gnn_off:gnn_off + batch, 0:8]    # (B, 8)
        feat = act_ref[feat_off:feat_off + batch, 0:24]   # (B, 24)

        # 0/1 selection matrices built in-register (no HBM constants, no reshapes)
        sum_e = _group_sum_mat(BB, BBE, edges)            # (BB, BBE): sum edges per (beta, b)
        exp_e = _group_expand_mat(BBE, BB, edges)         # (BBE, BB): broadcast row to its E edges
        sum_e2 = _group_sum_mat(batch, BE, edges)         # (B, BE):  sum edges per graph

        # SCB_encoder (second linear fused into w3a) -- batched over (beta, b)
        s = dot(sum_e, l1)                                              # (BB, 8)
        h = _relu(dot(s, W("w1")) + Bv("b1"))                           # (BB, 64)
        a = dot(h, W("w23a"))                                           # (BB, 128)

        # SCB_encoder2 first layer -- batched over (beta, b, e)
        z = _relu(dot(exp_e, a) + dot(l1, W("w3b")) + Bv("b3p"))        # (BBE, 128)

        # beta reduction: BETA contiguous, sublane-aligned slab adds (VPU, no matmul)
        zsum = z[0:BE, :]
        for j in range(1, beta):
            zsum = zsum + z[j * BE:(j + 1) * BE, :]                     # (BE, 128)

        # fused (w4 @ w5); BETA*b4@w5 + b5 baked into the bias
        h4 = _relu(dot(zsum, W("w45")) + Bv("b45"))                     # (BE, 32)

        # edge-sum first, then fused (w6 @ wm1l); E*b6@wm1l baked into bm1
        l1s = dot(sum_e2, h4)                                           # (B, 32)
        l1c = dot(l1s, W("w6m"))                                        # (B, 32)

        # stand-in GNN projection (pooled node features -> n_hid), in-kernel
        gnn = dot(pooled, W("wg")) + Bv("bg")                           # (B, 32)

        # final_mlp (wm1 split into gnn / L1 halves; last layer lane-dense)
        fin = _relu(dot(gnn, W("wm1g")) + l1c + Bv("bm1p"))
        fin = dot(fin, Wf("wm2")) + Bvf("bm2")                          # (B, 128), cols >= 8 are zero

        # SCB_encoder_feature
        ff = _relu(dot(feat, W("wf1")) + Bv("bf1"))
        ff = _relu(dot(ff, W("wf2")) + Bv("bf2"))
        ff = dot(ff, Wf("wf3")) + Bvf("bf3")                            # (B, 128)

        out_ref[...] = fin + ff                                         # single lane-dense store

    return kernel


def cyclenet_epd_pallas(L1, pooled, L1_feature, params):
    Bn, BETA, E, C = L1.shape
    assert C == 4

    slab_np, wlayout = pack_weights(params, BETA, E)
    act_np, alayout = pack_acts(np.asarray(L1, np.float32),
                                np.asarray(pooled, np.float32),
                                np.asarray(L1_feature, np.float32))
    slab = jnp.asarray(slab_np)
    act = jnp.asarray(act_np)

    kernel = make_kernel(Bn, BETA, E, wlayout, alayout)

    out = pl.pallas_call(
        kernel,
        out_shape=jax.ShapeDtypeStruct((Bn, 128), jnp.float32),
        grid_spec=pltpu.PrefetchScalarGridSpec(
            num_scalar_prefetch=0,
            grid=(1,),                            # single grid step: whole batch in one shot
            in_specs=[pl.BlockSpec(act.shape, lambda i: (0, 0)),
                      pl.BlockSpec(slab.shape, lambda i: (0, 0))],
            out_specs=pl.BlockSpec((Bn, 128), lambda i: (0, 0))),
        compiler_params=pltpu.CompilerParams(dimension_semantics=("arbitrary",)),
    )(act, slab)
    return out[:, :N_OUT]                         # lane-dense store in-kernel, slice host-side


# --------------------------- pure-JAX reference ------------------------------
def reference_forward(L1, pooled, L1_feature, p):
    # L1: (B, BETA, E, 4) -- torch layout before .transpose(1, 2); unfused math.
    W3 = jnp.concatenate([p["w3a"], p["w3b"]], axis=0)                   # (68, 128)
    Bn, BETA, E, _ = L1.shape
    gnn_out = pooled @ p["wg"] + p["bg"]                                 # stand-in GNN
    s = L1.sum(axis=2)                                                   # (B, BETA, 4)
    h = _relu(s @ p["w1"] + p["b1"]) @ p["w2"] + p["b2"]                 # (B, BETA, 64)
    L1_t = jnp.transpose(L1, (0, 2, 1, 3))                               # (B, E, BETA, 4)
    h_exp = jnp.broadcast_to(h[:, None], (Bn, E, BETA, 64))
    x2 = jnp.concatenate([h_exp, L1_t], axis=-1)                         # (B, E, BETA, 68)
    h2 = _relu(x2 @ W3 + p["b3"]) @ p["w4"] + p["b4"]                    # (B, E, BETA, 128)
    scb = h2.sum(axis=2)                                                 # (B, E, 128)
    l1o = _relu(scb @ p["w5"] + p["b5"]) @ p["w6"] + p["b6"]             # (B, E, N_HID)
    cat = jnp.concatenate([gnn_out, l1o.sum(axis=1)], axis=-1)
    fin = _relu(cat @ p["wm1"] + p["bm1"]) @ p["wm2"] + p["bm2"]
    ff = _relu(L1_feature @ p["wf1"] + p["bf1"])
    ff = _relu(ff @ p["wf2"] + p["bf2"])
    ff = ff @ p["wf3"] + p["bf3"]
    return fin + ff


# ----------------------------------- main ------------------------------------
if __name__ == "__main__":
    key = jax.random.PRNGKey(0)
    kp, kd = jax.random.split(key)
    params = make_params(kp)

    # ----- synthetic graph batch (B graphs) -----
    Ns = [8, 10]       # nodes per graph
    Es = [12, 16]      # edges per graph
    BETAS = [5, 5]     # cycle-basis rows per graph -> max_beta = min(10, 5) = 5 -> 20-dim SCB feature
    graphs = []
    for gi in range(B):
        kk = jax.random.split(jax.random.fold_in(kd, gi), 4)
        x = np.asarray(jax.random.normal(kk[0], (Ns[gi], NODE_FEAT), jnp.float32))
        edge_index = np.asarray(jax.random.randint(kk[1], (2, Es[gi]), 0, Ns[gi]))
        scb = np.zeros((BETAS[gi], Es[gi]), dtype=np.float32)
        for r in range(BETAS[gi]):
            perm = np.asarray(jax.random.permutation(jax.random.fold_in(kk[2], r), Es[gi]))[:8]
            sgn = np.asarray(jax.random.randint(jax.random.fold_in(kk[3], r), (8,), 0, 2)) * 2 - 1
            scb[r, perm] = sgn.astype(np.float32)
        graphs.append((x, edge_index, scb))

    max_edge = max(Es)
    max_beta = min(10, max(BETAS))

    # ----- host-side preprocessing (the data-dependent torch glue) -----
    L1_list, feat_list, pooled_list = [], [], []
    for (x, edge_index, scb) in graphs:
        SCB = np.abs(scb)                                                              # (beta, E)
        e_feat = np.transpose(x[edge_index], (1, 0, 2)).reshape(edge_index.shape[1], -1)  # (E, 4)
        SCB_feat = np.stack([e_feat[:, i] * SCB for i in range(e_feat.shape[1])], axis=2)  # (beta, E, 4)
        sel = SCB_feat[SCB.sum(axis=1) > max_beta]
        pad_emb, _ = pad_SCB_np(sel, max_edge, max_beta)                               # (1, max_beta, max_edge, 4)
        emb1 = extract_SCB_feature_np(np.concatenate([pad_emb[..., 0:1], pad_emb[..., 2:3]], axis=-1))
        emb2 = extract_SCB_feature_np(np.concatenate([pad_emb[..., 1:2], pad_emb[..., 3:4]], axis=-1))
        feat_list.append(np.concatenate([emb1, emb2])[None])
        L1_list.append(pad_emb)
        pooled_list.append(x.mean(axis=0, keepdims=True))

    L1 = jnp.asarray(np.concatenate(L1_list, axis=0), dtype=jnp.float32)               # (B, max_beta, max_edge, 4)
    L1_feature = jnp.asarray(np.concatenate(feat_list, axis=0), dtype=jnp.float32)     # (B, 20)
    assert L1_feature.shape == (B, 20)

    # TODO(synk): the reference `GNN` class is not defined in the source file; stand-in =
    # mean-pooled node features -> Linear(node_feat, n_hid), computed inside the kernel.
    pooled = jnp.asarray(np.concatenate(pooled_list, axis=0), dtype=jnp.float32)       # (B, NODE_FEAT)

    out = cyclenet_epd_pallas(L1, pooled, L1_feature, params)
    out = jax.block_until_ready(out)

    ref = jax.block_until_ready(reference_forward(L1, pooled, L1_feature, params))
    assert out.shape == (B, N_OUT)
    assert np.allclose(np.asarray(out), np.asarray(ref), rtol=2e-2, atol=2e-2), \
        float(np.abs(np.asarray(out) - np.asarray(ref)).max())
    print("KERNEL_OK")
</pallas_src>

<mosaic_0001>
module attributes {stable_mosaic.version = 11 : i64} {
  func.func @kernel(%arg0: i32, %arg1: memref<176x128xf32, #tpu.memory_space<vmem>>, %arg2: memref<472x128xf32, #tpu.memory_space<vmem>>, %arg3: memref<2x128xf32, #tpu.memory_space<vmem>>) attributes {dimension_semantics = [#tpu.dimension_semantics<arbitrary>], iteration_bounds = array<i64: 1>, scalar_prefetch = 0 : i64, scratch_operands = 0 : i64, tpu.core_type = #tpu.core_type<tc>, window_params = [{pipeline_mode = #tpu.pipeline_mode<synchronous>, transform_indices = @transform_0, window_bounds = array<i64: 176, 128>}, {pipeline_mode = #tpu.pipeline_mode<synchronous>, transform_indices = @transform_1, window_bounds = array<i64: 472, 128>}, {pipeline_mode = #tpu.pipeline_mode<synchronous>, transform_indices = @transform_2, window_bounds = array<i64: 2, 128>}]} {
    %c0 = arith.constant 0 : index
    %c0_0 = arith.constant 0 : index
    %0 = vector.load %arg1[%c0, %c0_0] : memref<176x128xf32, #tpu.memory_space<vmem>>, vector<160x8xf32>
    %c160 = arith.constant 160 : index
    %c0_1 = arith.constant 0 : index
    %1 = vector.load %arg1[%c160, %c0_1] : memref<176x128xf32, #tpu.memory_space<vmem>>, vector<2x8xf32>
    %c168 = arith.constant 168 : index
    %c0_2 = arith.constant 0 : index
    %2 = vector.load %arg1[%c168, %c0_2] : memref<176x128xf32, #tpu.memory_space<vmem>>, vector<2x24xf32>
    %3 = tpu.iota {dimensions = array<i32: 0>} : vector<10x160xi32>
    %4 = tpu.iota {dimensions = array<i32: 1>} : vector<10x160xi32>
    %c16_i32 = arith.constant 16 : i32
    %5 = vector.broadcast %c16_i32 : i32 to vector<10x160xi32>
    %6 = arith.muli %3, %5 : vector<10x160xi32>
    %7 = arith.cmpi sge, %4, %6 : vector<10x160xi32>
    %c16_i32_3 = arith.constant 16 : i32
    %8 = vector.broadcast %c16_i32_3 : i32 to vector<10x160xi32>
    %9 = arith.addi %6, %8 : vector<10x160xi32>
    %10 = arith.cmpi slt, %4, %9 : vector<10x160xi32>
    %11 = arith.andi %7, %10 : vector<10x160xi1>
    %12 = arith.extui %11 : vector<10x160xi1> to vector<10x160xi32>
    %13 = arith.sitofp %12 : vector<10x160xi32> to vector<10x160xf32>
    %14 = tpu.iota {dimensions = array<i32: 0>} : vector<160x10xi32>
    %15 = tpu.iota {dimensions = array<i32: 1>} : vector<160x10xi32>
    %c16_i32_4 = arith.constant 16 : i32
    %16 = vector.broadcast %c16_i32_4 : i32 to vector<160x10xi32>
    %17 = arith.muli %15, %16 : vector<160x10xi32>
    %18 = arith.cmpi sge, %14, %17 : vector<160x10xi32>
    %c16_i32_5 = arith.constant 16 : i32
    %19 = vector.broadcast %c16_i32_5 : i32 to vector<160x10xi32>
    %20 = arith.addi %17, %19 : vector<160x10xi32>
    %21 = arith.cmpi slt, %14, %20 : vector<160x10xi32>
    %22 = arith.andi %18, %21 : vector<160x10xi1>
    %23 = arith.extui %22 : vector<160x10xi1> to vector<160x10xi32>
    %24 = arith.sitofp %23 : vector<160x10xi32> to vector<160x10xf32>
    %25 = tpu.iota {dimensions = array<i32: 0>} : vector<2x32xi32>
    %26 = tpu.iota {dimensions = array<i32: 1>} : vector<2x32xi32>
    %c16_i32_6 = arith.constant 16 : i32
    %27 = vector.broadcast %c16_i32_6 : i32 to vector<2x32xi32>
    %28 = arith.muli %25, %27 : vector<2x32xi32>
    %29 = arith.cmpi sge, %26, %28 : vector<2x32xi32>
    %c16_i32_7 = arith.constant 16 : i32
    %30 = vector.broadcast %c16_i32_7 : i32 to vector<2x32xi32>
    %31 = arith.addi %28, %30 : vector<2x32xi32>
    %32 = arith.cmpi slt, %26, %31 : vector<2x32xi32>
    %33 = arith.andi %29, %32 : vector<2x32xi1>
    %34 = arith.extui %33 : vector<2x32xi1> to vector<2x32xi32>
    %35 = arith.sitofp %34 : vector<2x32xi32> to vector<2x32xf32>
    %cst = arith.constant dense<0.000000e+00> : vector<10x8xf32>
    %36 = tpu.matmul %13, %0, %cst {dimension_numbers = #tpu.dot_dimension_numbers<[1], [0], [0], [1], [0, 0, 1, 1], [], []>} : vector<10x160xf32>, vector<160x8xf32>, vector<10x8xf32> -> vector<10x8xf32>
    %c0_8 = arith.constant 0 : index
    %c0_9 = arith.constant 0 : index
    %37 = vector.load %arg2[%c0_8, %c0_9] : memref<472x128xf32, #tpu.memory_space<vmem>>, vector<8x64xf32>
    %cst_10 = arith.constant dense<0.000000e+00> : vector<10x64xf32>
    %38 = tpu.matmul %36, %37, %cst_10 {dimension_numbers = #tpu.dot_dimension_numbers<[1], [0], [0], [1], [0, 0, 1, 1], [], []>} : vector<10x8xf32>, vector<8x64xf32>, vector<10x64xf32> -> vector<10x64xf32>
    %c8 = arith.constant 8 : index
    %c0_11 = arith.constant 0 : index
    %39 = vector.load %arg2[%c8, %c0_11] : memref<472x128xf32, #tpu.memory_space<vmem>>, vector<1x64xf32>
    %40 = vector.broadcast %39 : vector<1x64xf32> to vector<10x64xf32>
    %41 = arith.addf %38, %40 : vector<10x64xf32>
    %cst_12 = arith.constant 0.000000e+00 : f32
    %42 = vector.broadcast %cst_12 : f32 to vector<10x64xf32>
    %43 = arith.maximumf %41, %42 : vector<10x64xf32>
    %c16 = arith.constant 16 : index
    %c0_13 = arith.constant 0 : index
    %44 = vector.load %arg2[%c16, %c0_13] : memref<472x128xf32, #tpu.memory_space<vmem>>, vector<64x128xf32>
    %cst_14 = arith.constant dense<0.000000e+00> : vector<10x128xf32>
    %45 = tpu.matmul %43, %44, %cst_14 {dimension_numbers = #tpu.dot_dimension_numbers<[1], [0], [0], [1], [0, 0, 1, 1], [], []>} : vector<10x64xf32>, vector<64x128xf32>, vector<10x128xf32> -> vector<10x128xf32>
    %cst_15 = arith.constant dense<0.000000e+00> : vector<160x128xf32>
    %46 = tpu.matmul %24, %45, %cst_15 {dimension_numbers = #tpu.dot_dimension_numbers<[1], [0], [0], [1], [0, 0, 1, 1], [], []>} : vector<160x10xf32>, vector<10x128xf32>, vector<160x128xf32> -> vector<160x128xf32>
    %c88 = arith.constant 88 : index
    %c0_16 = arith.constant 0 : index
    %47 = vector.load %arg2[%c88, %c0_16] : memref<472x128xf32, #tpu.memory_space<vmem>>, vector<8x128xf32>
    %cst_17 = arith.constant dense<0.000000e+00> : vector<160x128xf32>
    %48 = tpu.matmul %0, %47, %cst_17 {dimension_numbers = #tpu.dot_dimension_numbers<[1], [0], [0], [1], [0, 0, 1, 1], [], []>} : vector<160x8xf32>, vector<8x128xf32>, vector<160x128xf32> -> vector<160x128xf32>
    %49 = arith.addf %46, %48 : vector<160x128xf32>
    %c80 = arith.constant 80 : index
    %c0_18 = arith.constant 0 : index
    %50 = vector.load %arg2[%c80, %c0_18] : memref<472x128xf32, #tpu.memory_space<vmem>>, vector<1x128xf32>
    %51 = vector.broadcast %50 : vector<1x128xf32> to vector<160x128xf32>
    %52 = arith.addf %49, %51 : vector<160x128xf32>
    %cst_19 = arith.constant 0.000000e+00 : f32
    %53 = vector.broadcast %cst_19 : f32 to vector<160x128xf32>
    %54 = arith.maximumf %52, %53 : vector<160x128xf32>
    %55 = vector.extract_strided_slice %54 {offsets = [0, 0], sizes = [32, 128], strides = [1, 1]} : vector<160x128xf32> to vector<32x128xf32>
    %56 = vector.extract_strided_slice %54 {offsets = [32, 0], sizes = [32, 128], strides = [1, 1]} : vector<160x128xf32> to vector<32x128xf32>
    %57 = arith.addf %55, %56 : vector<32x128xf32>
    %58 = vector.extract_strided_slice %54 {offsets = [64, 0], sizes = [32, 128], strides = [1, 1]} : vector<160x128xf32> to vector<32x128xf32>
    %59 = arith.addf %57, %58 : vector<32x128xf32>
    %60 = vector.extract_strided_slice %54 {offsets = [96, 0], sizes = [32, 128], strides = [1, 1]} : vector<160x128xf32> to vector<32x128xf32>
    %61 = arith.addf %59, %60 : vector<32x128xf32>
    %62 = vector.extract_strided_slice %54 {offsets = [128, 0], sizes = [32, 128], strides = [1, 1]} : vector<160x128xf32> to vector<32x128xf32>
    %63 = arith.addf %61, %62 : vector<32x128xf32>
    %c96 = arith.constant 96 : index
    %c0_20 = arith.constant 0 : index
    %64 = vector.load %arg2[%c96, %c0_20] : memref<472x128xf32, #tpu.memory_space<vmem>>, vector<128x32xf32>
    %cst_21 = arith.constant dense<0.000000e+00> : vector<32x32xf32>
    %65 = tpu.matmul %63, %64, %cst_21 {dimension_numbers = #tpu.dot_dimension_numbers<[1], [0], [0], [1], [0, 0, 1, 1], [], []>} : vector<32x128xf32>, vector<128x32xf32>, vector<32x32xf32> -> vector<32x32xf32>
    %c224 = arith.constant 224 : index
    %c0_22 = arith.constant 0 : index
    %66 = vector.load %arg2[%c224, %c0_22] : memref<472x128xf32, #tpu.memory_space<vmem>>, vector<1x32xf32>
    %67 = vector.broadcast %66 : vector<1x32xf32> to vector<32x32xf32>
    %68 = arith.addf %65, %67 : vector<32x32xf32>
    %cst_23 = arith.constant 0.000000e+00 : f32
    %69 = vector.broadcast %cst_23 : f32 to vector<32x32xf32>
    %70 = arith.maximumf %68, %69 : vector<32x32xf32>
    %cst_24 = arith.constant dense<0.000000e+00> : vector<2x32xf32>
    %71 = tpu.matmul %35, %70, %cst_24 {dimension_numbers = #tpu.dot_dimension_numbers<[1], [0], [0], [1], [0, 0, 1, 1], [], []>} : vector<2x32xf32>, vector<32x32xf32>, vector<2x32xf32> -> vector<2x32xf32>
    %c232 = arith.constant 232 : index
    %c0_25 = arith.constant 0 : index
    %72 = vector.load %arg2[%c232, %c0_25] : memref<472x128xf32, #tpu.memory_space<vmem>>, vector<32x32xf32>
    %cst_26 = arith.constant dense<0.000000e+00> : vector<2x32xf32>
    %73 = tpu.matmul %71, %72, %cst_26 {dimension_numbers = #tpu.dot_dimension_numbers<[1], [0], [0], [1], [0, 0, 1, 1], [], []>} : vector<2x32xf32>, vector<32x32xf32>, vector<2x32xf32> -> vector<2x32xf32>
    %c456 = arith.constant 456 : index
    %c0_27 = arith.constant 0 : index
    %74 = vector.load %arg2[%c456, %c0_27] : memref<472x128xf32, #tpu.memory_space<vmem>>, vector<8x32xf32>
    %cst_28 = arith.constant dense<0.000000e+00> : vector<2x32xf32>
    %75 = tpu.matmul %1, %74, %cst_28 {dimension_numbers = #tpu.dot_dimension_numbers<[1], [0], [0], [1], [0, 0, 1, 1], [], []>} : vector<2x8xf32>, vector<8x32xf32>, vector<2x32xf32> -> vector<2x32xf32>
    %c464 = arith.constant 464 : index
    %c0_29 = arith.constant 0 : index
    %76 = vector.load %arg2[%c464, %c0_29] : memref<472x128xf32, #tpu.memory_space<vmem>>, vector<1x32xf32>
    %77 = vector.broadcast %76 : vector<1x32xf32> to vector<2x32xf32>
    %78 = arith.addf %75, %77 : vector<2x32xf32>
    %c264 = arith.constant 264 : index
    %c0_30 = arith.constant 0 : index
    %79 = vector.load %arg2[%c264, %c0_30] : memref<472x128xf32, #tpu.memory_space<vmem>>, vector<32x32xf32>
    %cst_31 = arith.constant dense<0.000000e+00> : vector<2x32xf32>
    %80 = tpu.matmul %78, %79, %cst_31 {dimension_numbers = #tpu.dot_dimension_numbers<[1], [0], [0], [1], [0, 0, 1, 1], [], []>} : vector<2x32xf32>, vector<32x32xf32>, vector<2x32xf32> -> vector<2x32xf32>
    %81 = arith.addf %80, %73 : vector<2x32xf32>
    %c296 = arith.constant 296 : index
    %c0_32 = arith.constant 0 : index
    %82 = vector.load %arg2[%c296, %c0_32] : memref<472x128xf32, #tpu.memory_space<vmem>>, vector<1x32xf32>
    %83 = vector.broadcast %82 : vector<1x32xf32> to vector<2x32xf32>
    %84 = arith.addf %81, %83 : vector<2x32xf32>
    %cst_33 = arith.constant 0.000000e+00 : f32
    %85 = vector.broadcast %cst_33 : f32 to vector<2x32xf32>
    %86 = arith.maximumf %84, %85 : vector<2x32xf32>
    %c304 = arith.constant 304 : index
    %c0_34 = arith.constant 0 : index
    %87 = vector.load %arg2[%c304, %c0_34] : memref<472x128xf32, #tpu.memory_space<vmem>>, vector<32x128xf32>
    %cst_35 = arith.constant dense<0.000000e+00> : vector<2x128xf32>
    %88 = tpu.matmul %86, %87, %cst_35 {dimension_numbers = #tpu.dot_dimension_numbers<[1], [0], [0], [1], [0, 0, 1, 1], [], []>} : vector<2x32xf32>, vector<32x128xf32>, vector<2x128xf32> -> vector<2x128xf32>
    %c336 = arith.constant 336 : index
    %c0_36 = arith.constant 0 : index
    %89 = vector.load %arg2[%c336, %c0_36] : memref<472x128xf32, #tpu.memory_space<vmem>>, vector<1x128xf32>
    %90 = vector.broadcast %89 : vector<1x128xf32> to vector<2x128xf32>
    %91 = arith.addf %88, %90 : vector<2x128xf32>
    %c344 = arith.constant 344 : index
    %c0_37 = arith.constant 0 : index
    %92 = vector.load %arg2[%c344, %c0_37] : memref<472x128xf32, #tpu.memory_space<vmem>>, vector<24x32xf32>
    %cst_38 = arith.constant dense<0.000000e+00> : vector<2x32xf32>
    %93 = tpu.matmul %2, %92, %cst_38 {dimension_numbers = #tpu.dot_dimension_numbers<[1], [0], [0], [1], [0, 0, 1, 1], [], []>} : vector<2x24xf32>, vector<24x32xf32>, vector<2x32xf32> -> vector<2x32xf32>
    %c368 = arith.constant 368 : index
    %c0_39 = arith.constant 0 : index
    %94 = vector.load %arg2[%c368, %c0_39] : memref<472x128xf32, #tpu.memory_space<vmem>>, vector<1x32xf32>
    %95 = vector.broadcast %94 : vector<1x32xf32> to vector<2x32xf32>
    %96 = arith.addf %93, %95 : vector<2x32xf32>
    %cst_40 = arith.constant 0.000000e+00 : f32
    %97 = vector.broadcast %cst_40 : f32 to vector<2x32xf32>
    %98 = arith.maximumf %96, %97 : vector<2x32xf32>
    %c376 = arith.constant 376 : index
    %c0_41 = arith.constant 0 : index
    %99 = vector.load %arg2[%c376, %c0_41] : memref<472x128xf32, #tpu.memory_space<vmem>>, vector<32x32xf32>
    %cst_42 = arith.constant dense<0.000000e+00> : vector<2x32xf32>
    %100 = tpu.matmul %98, %99, %cst_42 {dimension_numbers = #tpu.dot_dimension_numbers<[1], [0], [0], [1], [0, 0, 1, 1], [], []>} : vector<2x32xf32>, vector<32x32xf32>, vector<2x32xf32> -> vector<2x32xf32>
    %c408 = arith.constant 408 : index
    %c0_43 = arith.constant 0 : index
    %101 = vector.load %arg2[%c408, %c0_43] : memref<472x128xf32, #tpu.memory_space<vmem>>, vector<1x32xf32>
    %102 = vector.broadcast %101 : vector<1x32xf32> to vector<2x32xf32>
    %103 = arith.addf %100, %102 : vector<2x32xf32>
    %cst_44 = arith.constant 0.000000e+00 : f32
    %104 = vector.broadcast %cst_44 : f32 to vector<2x32xf32>
    %105 = arith.maximumf %103, %104 : vector<2x32xf32>
    %c416 = arith.constant 416 : index
    %c0_45 = arith.constant 0 : index
    %106 = vector.load %arg2[%c416, %c0_45] : memref<472x128xf32, #tpu.memory_space<vmem>>, vector<32x128xf32>
    %cst_46 = arith.constant dense<0.000000e+00> : vector<2x128xf32>
    %107 = tpu.matmul %105, %106, %cst_46 {dimension_numbers = #tpu.dot_dimension_numbers<[1], [0], [0], [1], [0, 0, 1, 1], [], []>} : vector<2x32xf32>, vector<32x128xf32>, vector<2x128xf32> -> vector<2x128xf32>
    %c448 = arith.constant 448 : index
    %c0_47 = arith.constant 0 : index
    %108 = vector.load %arg2[%c448, %c0_47] : memref<472x128xf32, #tpu.memory_space<vmem>>, vector<1x128xf32>
    %109 = vector.broadcast %108 : vector<1x128xf32> to vector<2x128xf32>
    %110 = arith.addf %107, %109 : vector<2x128xf32>
    %111 = arith.addf %91, %110 : vector<2x128xf32>
    %c0_48 = arith.constant 0 : index
    %c0_49 = arith.constant 0 : index
    %112 = vector.load %arg3[%c0_48, %c0_49] : memref<2x128xf32, #tpu.memory_space<vmem>>, vector<2x128xf32>
    tpu.vector_store %arg3[%c0_48, %c0_49], %111 {strides = array<i32>} : memref<2x128xf32, #tpu.memory_space<vmem>>, vector<2x128xf32>,
    return
  }
  func.func @transform_0(%arg0: i32) -> (i32, i32) {
    %c0_i32 = arith.constant 0 : i32
    %c0_i32_0 = arith.constant 0 : i32
    %c0_i32_1 = arith.constant 0 : i32
    return %c0_i32, %c0_i32_0 : i32, i32
  }
  func.func @transform_1(%arg0: i32) -> (i32, i32) {
    %c0_i32 = arith.constant 0 : i32
    %c0_i32_0 = arith.constant 0 : i32
    %c0_i32_1 = arith.constant 0 : i32
    return %c0_i32, %c0_i32_0 : i32, i32
  }
  func.func @transform_2(%arg0: i32) -> (i32, i32) {
    %c0_i32 = arith.constant 0 : i32
    %c0_i32_0 = arith.constant 0 : i32
    %c0_i32_1 = arith.constant 0 : i32
    return %c0_i32, %c0_i32_0 : i32, i32
  }
}

</mosaic_0001>

<llo_original>
// kernel: tpu_custom_call.1
$region0: #{tpu_custom_call.1}
  #allocation0 [shape = 'u32[]', space=smem, size = 0x4, offset = 0x4, fixed_abs, tag = 'smem constant byte address 0x4 - core index']
  #allocation1 [shape = 'u32[144,128]{1,0:T(1,128)}', space=vmem, size = 0x12000, scoped, tag = 'internal scratch']
  %s0 = inlined_call_operand.hbm [shape: f32[176,128], index: 0, kind: input, shape index: {}]
  %s1 = inlined_call_operand.hbm [shape: f32[472,128], index: 1, kind: input, shape index: {}]
  %s2 = inlined_call_operand.hbm [shape: f32[2,128], index: 2, kind: output, shape index: {}]
  %s3 = sld [smem:[#allocation0]]
  $region26: #{tpu_custom_call.1} parent=0
    _
  %s5 = ssub.s32 1, %s3
  %s6 = scalar_select 0, %s5, %s3
  $region1: #{tpu_custom_call.1} parent=0
    #allocation2 [shape = 'u8[90112]{0}', space=vmem, size = 0x16000, scoped, tag = 'input window, operand 0, single buffered']
    #allocation3 [shape = 's32[1]{0}', space=sflag, size = 0x4, scoped, tag = 'scoped memory for tpu_custom_call.1']
    #allocation4 [shape = 's32[1]{0}', space=sflag, size = 0x4, scoped, tag = 'scoped memory for tpu_custom_call.1']
    #allocation5 [shape = 'u8[241664]{0}', space=vmem, size = 0x3b000, scoped, tag = 'input window, operand 1, single buffered']
    #allocation6 [shape = 's32[1]{0}', space=sflag, size = 0x4, scoped, tag = 'scoped memory for tpu_custom_call.1']
    #allocation7 [shape = 'u8[1024]{0}', space=vmem, size = 0x400, scoped, tag = 'output window, operand 0, single buffered']
    %7 = vsyncpa [#allocation3], 0
    %8 = vsyncpa [#allocation6], 0
    %9 = vsyncpa [#allocation4], 0
    // Predicated region
    $region2: #{tpu_custom_call.1} parent=1 // pred_check
      _
    $region3: #{tpu_custom_call.1} parent=1 // pred_check_branch
      %11 = sbr.rel (0) target = $region5
    $region4: #{tpu_custom_call.1} parent=1 // pred_region
      %s13 = ssub.s32 2816, 2816
      %14 = vsyncadd [#allocation3], %s13
      %s15 = sshll.u32 [#allocation2], 4
      %s16 = int_to_ptr.vmem [resolvable:$true] %s15
      %21 = dma.hbm_to_vmem [thread:$0]  %s0, 2816, %s16, [#allocation3], 128, 128, 8
    $region5: #{tpu_custom_call.1} parent=1 // pred_fallthru
      _
    // Predicated region
    $region6: #{tpu_custom_call.1} parent=1 // pred_check
      _
    $region7: #{tpu_custom_call.1} parent=1 // pred_check_branch
      %23 = sbr.rel (0) target = $region9
    $region8: #{tpu_custom_call.1} parent=1 // pred_region
      %s25 = ssub.s32 7552, 7552
      %26 = vsyncadd [#allocation6], %s25
      %s27 = sshll.u32 [#allocation5], 4
      %s28 = int_to_ptr.vmem [resolvable:$true] %s27
      %33 = dma.hbm_to_vmem [thread:$0]  %s1, 7552, %s28, [#allocation6], 128, 128, 8
    $region9: #{tpu_custom_call.1} parent=1 // pred_fallthru
      _
    // Predicated region
    $region10: #{tpu_custom_call.1} parent=1 // pred_check
      _
    $region11: #{tpu_custom_call.1} parent=1 // pred_check_branch
      %35 = sbr.rel (0) target = $region13
    $region12: #{tpu_custom_call.1} parent=1 // pred_region
      %36 = dma.done [#allocation3], 2816
    $region13: #{tpu_custom_call.1} parent=1 // pred_fallthru
      _
    // Predicated region
    $region14: #{tpu_custom_call.1} parent=1 // pred_check
      _
    $region15: #{tpu_custom_call.1} parent=1 // pred_check_branch
      %38 = sbr.rel (0) target = $region17
    $region16: #{tpu_custom_call.1} parent=1 // pred_region
      %39 = dma.done [#allocation6], 7552
    $region17: #{tpu_custom_call.1} parent=1 // pred_fallthru
      _
    %v40 = vld [vmem:[#allocation2] sm:$0xff]
    %v41 = vld [vmem:[#allocation2 + $0x8] sm:$0xff]
    %v42 = vld [vmem:[#allocation2 + $0x10] sm:$0xff]
    %v43 = vld [vmem:[#allocation2 + $0x18] sm:$0xff]
    %v44 = vld [vmem:[#allocation2 + $0x20] sm:$0xff]
    %v45 = vld [vmem:[#allocation2 + $0x28] sm:$0xff]
    %v46 = vld [vmem:[#allocation2 + $0x30] sm:$0xff]
    %v47 = vld [vmem:[#allocation2 + $0x38] sm:$0xff]
    %v48 = vld [vmem:[#allocation2 + $0x40] sm:$0xff]
    %v49 = vld [vmem:[#allocation2 + $0x48] sm:$0xff]
    %v50 = vld [vmem:[#allocation2 + $0x50] sm:$0xff]
    %v51 = vld [vmem:[#allocation2 + $0x58] sm:$0xff]
    %v52 = vld [vmem:[#allocation2 + $0x60] sm:$0xff]
    %v53 = vld [vmem:[#allocation2 + $0x68] sm:$0xff]
    %v54 = vld [vmem:[#allocation2 + $0x70] sm:$0xff]
    %v55 = vld [vmem:[#allocation2 + $0x78] sm:$0xff]
    %v56 = vld [vmem:[#allocation2 + $0x80] sm:$0xff]
    %v57 = vld [vmem:[#allocation2 + $0x88] sm:$0xff]
    %v58 = vld [vmem:[#allocation2 + $0x90] sm:$0xff]
    %v59 = vld [vmem:[#allocation2 + $0x98] sm:$0xff]
    %v60 = vld [vmem:[#allocation2 + $0xa0] sm:$0x3]
    %v61 = vld [vmem:[#allocation2 + $0xa8] sm:$0x3]
    %v62 = vlaneseq
    %v63 = vshrl.u32 %v62, 7
    %v64 = vadd.s32 %v63, 8
    %v65 = vlaneseq
    %v66 = vand.u32 %v65, 127
    %v67 = vadd.s32 %v66, 128
    %v68 = vmul.u32 %v63, 16
    %v69 = vmul.u32 %v64, 16
    %vm70 = vcmp.ge.s32.totalorder %v66, %v68
    %vm71 = vcmp.ge.s32.totalorder %v67, %v68
    %vm72 = vcmp.ge.s32.totalorder %v66, %v69
    %vm73 = vcmp.ge.s32.totalorder %v67, %v69
    %v74 = vadd.s32 %v68, 16
    %v75 = vadd.s32 %v69, 16
    %vm76 = vcmp.lt.s32.totalorder %v66, %v74
    %vm77 = vcmp.lt.s32.totalorder %v67, %v74
    %vm78 = vcmp.lt.s32.totalorder %v66, %v75
    %vm79 = vcmp.lt.s32.totalorder %v67, %v75
    %vm80 = vmand %vm70, %vm76
    %vm81 = vmand %vm71, %vm77
    %vm82 = vmand %vm72, %vm78
    %vm83 = vmand %vm73, %vm79
    %v84 = vsel %vm80, 1, 0
    %v85 = vsel %vm81, 1, 0
    %v86 = vsel %vm82, 1, 0
    %v87 = vsel %vm83, 1, 0
    %v88 = vcvt.s32.f32 %v84
    %v89 = vcvt.s32.f32 %v85
    %v90 = vcvt.s32.f32 %v86
    %v91 = vcvt.s32.f32 %v87
    %v92 = vadd.s32 %v63, 16
    %v93 = vadd.s32 %v63, 24
    %v94 = vadd.s32 %v63, 32
    %v95 = vadd.s32 %v63, 40
    %v96 = vadd.s32 %v63, 48
    %v97 = vadd.s32 %v63, 56
    %v98 = vadd.s32 %v63, 64
    %v99 = vadd.s32 %v63, 72
    %v100 = vadd.s32 %v63, 80
    %v101 = vadd.s32 %v63, 88
    %v102 = vadd.s32 %v63, 96
    %v103 = vadd.s32 %v63, 104
    %v104 = vadd.s32 %v63, 112
    %v105 = vadd.s32 %v63, 120
    %v106 = vadd.s32 %v63, 128
    %v107 = vadd.s32 %v63, 136
    %v108 = vadd.s32 %v63, 144
    %v109 = vadd.s32 %v63, 152
    %v110 = vmul.u32 %v66, 16
    %vm111 = vcmp.ge.s32.totalorder %v63, %v110
    %vm112 = vcmp.ge.s32.totalorder %v64, %v110
    %vm113 = vcmp.ge.s32.totalorder %v92, %v110
    %vm114 = vcmp.ge.s32.totalorder %v93, %v110
    %vm115 = vcmp.ge.s32.totalorder %v94, %v110
    %vm116 = vcmp.ge.s32.totalorder %v95, %v110
    %vm117 = vcmp.ge.s32.totalorder %v96, %v110
    %vm118 = vcmp.ge.s32.totalorder %v97, %v110
    %vm119 = vcmp.ge.s32.totalorder %v98, %v110
    %vm120 = vcmp.ge.s32.totalorder %v99, %v110
    %vm121 = vcmp.ge.s32.totalorder %v100, %v110
    %vm122 = vcmp.ge.s32.totalorder %v101, %v110
    %vm123 = vcmp.ge.s32.totalorder %v102, %v110
    %vm124 = vcmp.ge.s32.totalorder %v103, %v110
    %vm125 = vcmp.ge.s32.totalorder %v104, %v110
    %vm126 = vcmp.ge.s32.totalorder %v105, %v110
    %vm127 = vcmp.ge.s32.totalorder %v106, %v110
    %vm128 = vcmp.ge.s32.totalorder %v107, %v110
    %vm129 = vcmp.ge.s32.totalorder %v108, %v110
    %vm130 = vcmp.ge.s32.totalorder %v109, %v110
    %v131 = vadd.s32 %v110, 16
    %vm132 = vcmp.lt.s32.totalorder %v63, %v131
    %vm133 = vcmp.lt.s32.totalorder %v64, %v131
    %vm134 = vcmp.lt.s32.totalorder %v92, %v131
    %vm135 = vcmp.lt.s32.totalorder %v93, %v131
    %vm136 = vcmp.lt.s32.totalorder %v94, %v131
    %vm137 = vcmp.lt.s32.totalorder %v95, %v131
    %vm138 = vcmp.lt.s32.totalorder %v96, %v131
    %vm139 = vcmp.lt.s32.totalorder %v97, %v131
    %vm140 = vcmp.lt.s32.totalorder %v98, %v131
    %vm141 = vcmp.lt.s32.totalorder %v99, %v131
    %vm142 = vcmp.lt.s32.totalorder %v100, %v131
    %vm143 = vcmp.lt.s32.totalorder %v101, %v131
    %vm144 = vcmp.lt.s32.totalorder %v102, %v131
    %vm145 = vcmp.lt.s32.totalorder %v103, %v131
    %vm146 = vcmp.lt.s32.totalorder %v104, %v131
    %vm147 = vcmp.lt.s32.totalorder %v105, %v131
    %vm148 = vcmp.lt.s32.totalorder %v106, %v131
    %vm149 = vcmp.lt.s32.totalorder %v107, %v131
    %vm150 = vcmp.lt.s32.totalorder %v108, %v131
    %vm151 = vcmp.lt.s32.totalorder %v109, %v131
    %vm152 = vmand %vm111, %vm132
    %vm153 = vmand %vm112, %vm133
    %vm154 = vmand %vm113, %vm134
    %vm155 = vmand %vm114, %vm135
    %vm156 = vmand %vm115, %vm136
    %vm157 = vmand %vm116, %vm137
    %vm158 = vmand %vm117, %vm138
    %vm159 = vmand %vm118, %vm139
    %vm160 = vmand %vm119, %vm140
    %vm161 = vmand %vm120, %vm141
    %vm162 = vmand %vm121, %vm142
    %vm163 = vmand %vm122, %vm143
    %vm164 = vmand %vm123, %vm144
    %vm165 = vmand %vm124, %vm145
    %vm166 = vmand %vm125, %vm146
    %vm167 = vmand %vm126, %vm147
    %vm168 = vmand %vm127, %vm148
    %vm169 = vmand %vm128, %vm149
    %vm170 = vmand %vm129, %vm150
    %vm171 = vmand %vm130, %vm151
    %v172 = vsel %vm152, 1, 0
    %v173 = vsel %vm153, 1, 0
    %v174 = vsel %vm154, 1, 0
    %v175 = vsel %vm155, 1, 0
    %v176 = vsel %vm156, 1, 0
    %v177 = vsel %vm157, 1, 0
    %v178 = vsel %vm158, 1, 0
    %v179 = vsel %vm159, 1, 0
    %v180 = vsel %vm160, 1, 0
    %v181 = vsel %vm161, 1, 0
    %v182 = vsel %vm162, 1, 0
    %v183 = vsel %vm163, 1, 0
    %v184 = vsel %vm164, 1, 0
    %v185 = vsel %vm165, 1, 0
    %v186 = vsel %vm166, 1, 0
    %v187 = vsel %vm167, 1, 0
    %v188 = vsel %vm168, 1, 0
    %v189 = vsel %vm169, 1, 0
    %v190 = vsel %vm170, 1, 0
    %v191 = vsel %vm171, 1, 0
    %v192 = vcvt.s32.f32 %v172
    %v193 = vcvt.s32.f32 %v173
    %v194 = vcvt.s32.f32 %v174
    %v195 = vcvt.s32.f32 %v175
    %v196 = vcvt.s32.f32 %v176
    %v197 = vcvt.s32.f32 %v177
    %v198 = vcvt.s32.f32 %v178
    %v199 = vcvt.s32.f32 %v179
    %v200 = vcvt.s32.f32 %v180
    %v201 = vcvt.s32.f32 %v181
    %v202 = vcvt.s32.f32 %v182
    %v203 = vcvt.s32.f32 %v183
    %v204 = vcvt.s32.f32 %v184
    %v205 = vcvt.s32.f32 %v185
    %v206 = vcvt.s32.f32 %v186
    %v207 = vcvt.s32.f32 %v187
    %v208 = vcvt.s32.f32 %v188
    %v209 = vcvt.s32.f32 %v189
    %v210 = vcvt.s32.f32 %v190
    %v211 = vcvt.s32.f32 %v191
    %vm212 = vcmask 261120
    %v214 = vsel %vm212, %v89, 0
    %v217 = vsel %vm212, %v91, 0
    %219 = vmatprep.subr.mxu0 0.0
    %220 = vmatpush1.msra.mxu0 %v55
    %221 = vmatprep.subr.mxu0 0.0
    %222 = vmatpush1.msra.mxu0 %v54
    %223 = vmatprep.subr.mxu0 0.0
    %224 = vmatpush1.msra.mxu0 %v53
    %225 = vmatprep.subr.mxu0 0.0
    %226 = vmatpush1.msra.mxu0 %v52
    %227 = vmatprep.subr.mxu0 0.0
    %228 = vmatpush1.msra.mxu0 %v51
    %229 = vmatprep.subr.mxu0 0.0
    %230 = vmatpush1.msra.mxu0 %v50
    %231 = vmatprep.subr.mxu0 0.0
    %232 = vmatpush1.msra.mxu0 %v49
    %233 = vmatprep.subr.mxu0 0.0
    %234 = vmatpush1.msra.mxu0 %v48
    %235 = vmatprep.subr.mxu0 0.0
    %236 = vmatpush1.msra.mxu0 %v47
    %237 = vmatprep.subr.mxu0 0.0
    %238 = vmatpush1.msra.mxu0 %v46
    %239 = vmatprep.subr.mxu0 0.0
    %240 = vmatpush1.msra.mxu0 %v45
    %241 = vmatprep.subr.mxu0 0.0
    %242 = vmatpush1.msra.mxu0 %v44
    %243 = vmatprep.subr.mxu0 0.0
    %244 = vmatpush1.msra.mxu0 %v43
    %245 = vmatprep.subr.mxu0 0.0
    %246 = vmatpush1.msra.mxu0 %v42
    %247 = vmatprep.subr.mxu0 0.0
    %248 = vmatpush1.msra.mxu0 %v41
    %249 = vmatprep.subr.mxu0 0.0
    %250 = vmatpush1.msra.mxu0 %v40
    %251 = vmatprep.subr.mxu0 0.0
    %252 = vmatpush2.msra.mxu0 0.0
    %253 = vmatprep.subr.mxu0 0.0
    %254 = vmatpush2.msra.mxu0 0.0
    %255 = vmatprep.subr.mxu0 0.0
    %256 = vmatpush2.msra.mxu0 0.0
    %257 = vmatprep.subr.mxu0 0.0
    %258 = vmatpush2.msra.mxu0 0.0
    %259 = vmatprep.subr.mxu0 0.0
    %260 = vmatpush2.msra.mxu0 0.0
    %261 = vmatprep.subr.mxu0 0.0
    %262 = vmatpush2.msra.mxu0 0.0
    %263 = vmatprep.subr.mxu0 0.0
    %264 = vmatpush2.msra.mxu0 0.0
    %265 = vmatprep.subr.mxu0 0.0
    %266 = vmatpush2.msra.mxu0 0.0
    %267 = vmatprep.subr.mxu0 0.0
    %268 = vmatpush2.msra.mxu0 0.0
    %269 = vmatprep.subr.mxu0 0.0
    %270 = vmatpush2.msra.mxu0 0.0
    %271 = vmatprep.subr.mxu0 0.0
    %272 = vmatpush2.msra.mxu0 0.0
    %273 = vmatprep.subr.mxu0 0.0
    %274 = vmatpush2.msra.mxu0 0.0
    %275 = vmatprep.subr.mxu0 0.0
    %276 = vmatpush2.msra.mxu0 %v59
    %277 = vmatprep.subr.mxu0 0.0
    %278 = vmatpush2.msra.mxu0 %v58
    %279 = vmatprep.subr.mxu0 0.0
    %280 = vmatpush2.msra.mxu0 %v57
    %281 = vmatprep.subr.mxu0 0.0
    %282 = vmatpush2.msra.mxu0 %v56
    %283 = vmatprep.mubr.f32.mxu0 %v214
    %284 = vmatmul.mubr.f32.gmra.mxu0 %v88
    %v285 = vpop.f32.mrf.mxu0
    %v286 = vadd.f32 0.0, %v285
    %v287 = vpop.f32.mrf.mxu0
    %288 = vmatprep.mubr.f32.mxu0 %v217
    %289 = vmatmul.mubr.f32.gmra.mxu0 %v90
    %v290 = vpop.f32.mrf.mxu0
    %v291 = vadd.f32 0.0, %v290
    %v292 = vpop.f32.mrf.mxu0
    %293 = vdwg.mxu0
    %v294 = vld [vmem:[#allocation5] sm:$0xff]
    %v295 = vld [vmem:[#allocation5 + $0x8] sm:$0x1]
    %v296 = vlaneseq
    %v297 = vshrl.u32 %v296, 7
    %v298 = vsub.s32 0, %v297
    %v299 = vrot.slane %v295, %v298
    %vm300 = vcmask 64512
    %v302 = vsel %vm300, %v286, 0
    %v305 = vsel %vm300, %v291, 0
    %307 = vmatprep.subr.mxu0 0.0
    %308 = vmatpush1.msra.mxu0 0.0
    %309 = vmatprep.subr.mxu0 0.0
    %310 = vmatpush1.msra.mxu0 0.0
    %311 = vmatprep.subr.mxu0 0.0
    %312 = vmatpush1.msra.mxu0 0.0
    %313 = vmatprep.subr.mxu0 0.0
    %314 = vmatpush1.msra.mxu0 0.0
    %315 = vmatprep.subr.mxu0 0.0
    %316 = vmatpush1.msra.mxu0 0.0
    %317 = vmatprep.subr.mxu0 0.0
    %318 = vmatpush1.msra.mxu0 0.0
    %319 = vmatprep.subr.mxu0 0.0
    %320 = vmatpush1.msra.mxu0 0.0
    %321 = vmatprep.subr.mxu0 0.0
    %322 = vmatpush1.msra.mxu0 0.0
    %323 = vmatprep.subr.mxu0 0.0
    %324 = vmatpush1.msra.mxu0 0.0
    %325 = vmatprep.subr.mxu0 0.0
    %326 = vmatpush1.msra.mxu0 0.0
    %327 = vmatprep.subr.mxu0 0.0
    %328 = vmatpush1.msra.mxu0 0.0
    %329 = vmatprep.subr.mxu0 0.0
    %330 = vmatpush1.msra.mxu0 0.0
    %331 = vmatprep.subr.mxu0 0.0
    %332 = vmatpush1.msra.mxu0 0.0
    %333 = vmatprep.subr.mxu0 0.0
    %334 = vmatpush1.msra.mxu0 0.0
    %335 = vmatprep.subr.mxu0 0.0
    %336 = vmatpush1.msra.mxu0 0.0
    %337 = vmatprep.subr.mxu0 0.0
    %338 = vmatpush1.msra.mxu0 %v294
    %339 = vmatprep.subr.mxu0 0.0
    %340 = vmatpush2.msra.mxu0 0.0
    %341 = vmatprep.subr.mxu0 0.0
    %342 = vmatpush2.msra.mxu0 0.0
    %343 = vmatprep.subr.mxu0 0.0
    %344 = vmatpush2.msra.mxu0 0.0
    %345 = vmatprep.subr.mxu0 0.0
    %346 = vmatpush2.msra.mxu0 0.0
    %347 = vmatprep.subr.mxu0 0.0
    %348 = vmatpush2.msra.mxu0 0.0
    %349 = vmatprep.subr.mxu0 0.0
    %350 = vmatpush2.msra.mxu0 0.0
    %351 = vmatprep.subr.mxu0 0.0
    %352 = vmatpush2.msra.mxu0 0.0
    %353 = vmatprep.subr.mxu0 0.0
    %354 = vmatpush2.msra.mxu0 0.0
    %355 = vmatprep.subr.mxu0 0.0
    %356 = vmatpush2.msra.mxu0 0.0
    %357 = vmatprep.subr.mxu0 0.0
    %358 = vmatpush2.msra.mxu0 0.0
    %359 = vmatprep.subr.mxu0 0.0
    %360 = vmatpush2.msra.mxu0 0.0
    %361 = vmatprep.subr.mxu0 0.0
    %362 = vmatpush2.msra.mxu0 0.0
    %363 = vmatprep.subr.mxu0 0.0
    %364 = vmatpush2.msra.mxu0 0.0
    %365 = vmatprep.subr.mxu0 0.0
    %366 = vmatpush2.msra.mxu0 0.0
    %367 = vmatprep.subr.mxu0 0.0
    %368 = vmatpush2.msra.mxu0 0.0
    %369 = vmatprep.subr.mxu0 0.0
    %370 = vmatpush2.msra.mxu0 0.0
    %371 = vmatprep.mubr.f32.mxu0 0.0
    %372 = vmatmul.mubr.f32.gmra.mxu0 %v302
    %v373 = vpop.f32.mrf.mxu0
    %v374 = vadd.f32 %v299, %v373
    %v375 = vpop.f32.mrf.mxu0
    %376 = vmatprep.mubr.f32.mxu0 0.0
    %377 = vmatmul.mubr.f32.gmra.mxu0 %v305
    %v378 = vpop.f32.mrf.mxu0
    %v379 = vadd.f32 %v299, %v378
    %v380 = vpop.f32.mrf.mxu0
    %381 = vdwg.mxu0
    %v382 = vmax.f32 %v374, 0.0
    %v383 = vmax.f32 %v379, 0.0
    %v384 = vld [vmem:[#allocation5 + $0x10] sm:$0xff]
    %v385 = vld [vmem:[#allocation5 + $0x18] sm:$0xff]
    %v386 = vld [vmem:[#allocation5 + $0x20] sm:$0xff]
    %v387 = vld [vmem:[#allocation5 + $0x28] sm:$0xff]
    %v388 = vld [vmem:[#allocation5 + $0x30] sm:$0xff]
    %v389 = vld [vmem:[#allocation5 + $0x38] sm:$0xff]
    %v390 = vld [vmem:[#allocation5 + $0x40] sm:$0xff]
    %v391 = vld [vmem:[#allocation5 + $0x48] sm:$0xff]
    %vm392 = vcmask 523264
    %v394 = vsel %vm392, %v382, 0
    %v397 = vsel %vm392, %v383, 0
    %399 = vmatprep.subr.mxu0 0.0
    %400 = vmatpush1.msra.mxu0 0.0
    %401 = vmatprep.subr.mxu0 0.0
    %402 = vmatpush1.msra.mxu0 0.0
    %403 = vmatprep.subr.mxu0 0.0
    %404 = vmatpush1.msra.mxu0 0.0
    %405 = vmatprep.subr.mxu0 0.0
    %406 = vmatpush1.msra.mxu0 0.0
    %407 = vmatprep.subr.mxu0 0.0
    %408 = vmatpush1.msra.mxu0 0.0
    %409 = vmatprep.subr.mxu0 0.0
    %410 = vmatpush1.msra.mxu0 0.0
    %411 = vmatprep.subr.mxu0 0.0
    %412 = vmatpush1.msra.mxu0 0.0
    %413 = vmatprep.subr.mxu0 0.0
    %414 = vmatpush1.msra.mxu0 0.0
    %415 = vmatprep.subr.mxu0 0.0
    %416 = vmatpush1.msra.mxu0 %v391
    %417 = vmatprep.subr.mxu0 0.0
    %418 = vmatpush1.msra.mxu0 %v390
    %419 = vmatprep.subr.mxu0 0.0
    %420 = vmatpush1.msra.mxu0 %v389
    %421 = vmatprep.subr.mxu0 0.0
    %422 = vmatpush1.msra.mxu0 %v388
    %423 = vmatprep.subr.mxu0 0.0
    %424 = vmatpush1.msra.mxu0 %v387
    %425 = vmatprep.subr.mxu0 0.0
    %426 = vmatpush1.msra.mxu0 %v386
    %427 = vmatprep.subr.mxu0 0.0
    %428 = vmatpush1.msra.mxu0 %v385
    %429 = vmatprep.subr.mxu0 0.0
    %430 = vmatpush1.msra.mxu0 %v384
    %431 = vmatprep.subr.mxu0 0.0
    %432 = vmatpush2.msra.mxu0 0.0
    %433 = vmatprep.subr.mxu0 0.0
    %434 = vmatpush2.msra.mxu0 0.0
    %435 = vmatprep.subr.mxu0 0.0
    %436 = vmatpush2.msra.mxu0 0.0
    %437 = vmatprep.subr.mxu0 0.0
    %438 = vmatpush2.msra.mxu0 0.0
    %439 = vmatprep.subr.mxu0 0.0
    %440 = vmatpush2.msra.mxu0 0.0
    %441 = vmatprep.subr.mxu0 0.0
    %442 = vmatpush2.msra.mxu0 0.0
    %443 = vmatprep.subr.mxu0 0.0
    %444 = vmatpush2.msra.mxu0 0.0
    %445 = vmatprep.subr.mxu0 0.0
    %446 = vmatpush2.msra.mxu0 0.0
    %447 = vmatprep.subr.mxu0 0.0
    %448 = vmatpush2.msra.mxu0 0.0
    %449 = vmatprep.subr.mxu0 0.0
    %450 = vmatpush2.msra.mxu0 0.0
    %451 = vmatprep.subr.mxu0 0.0
    %452 = vmatpush2.msra.mxu0 0.0
    %453 = vmatprep.subr.mxu0 0.0
    %454 = vmatpush2.msra.mxu0 0.0
    %455 = vmatprep.subr.mxu0 0.0
    %456 = vmatpush2.msra.mxu0 0.0
    %457 = vmatprep.subr.mxu0 0.0
    %458 = vmatpush2.msra.mxu0 0.0
    %459 = vmatprep.subr.mxu0 0.0
    %460 = vmatpush2.msra.mxu0 0.0
    %461 = vmatprep.subr.mxu0 0.0
    %462 = vmatpush2.msra.mxu0 0.0
    %463 = vmatprep.mubr.f32.mxu0 0.0
    %464 = vmatmul.mubr.f32.gmra.mxu0 %v394
    %v465 = vpop.f32.mrf.mxu0
    %v466 = vadd.f32 0.0, %v465
    %v467 = vpop.f32.mrf.mxu0
    %468 = vmatprep.mubr.f32.mxu0 0.0
    %469 = vmatmul.mubr.f32.gmra.mxu0 %v397
    %v470 = vpop.f32.mrf.mxu0
    %v471 = vadd.f32 0.0, %v470
    %v472 = vpop.f32.mrf.mxu0
    %473 = vdwg.mxu0
    %v474 = vld [vmem:[#allocation5 + $0x58] sm:$0xff]
    %v476 = vsel %vm300, %v40, 0
    %v479 = vsel %vm300, %v41, 0
    %v482 = vsel %vm300, %v42, 0
    %v485 = vsel %vm300, %v43, 0
    %v488 = vsel %vm300, %v44, 0
    %v491 = vsel %vm300, %v45, 0
    %v494 = vsel %vm300, %v46, 0
    %v497 = vsel %vm300, %v47, 0
    %v500 = vsel %vm300, %v48, 0
    %v503 = vsel %vm300, %v49, 0
    %v506 = vsel %vm300, %v50, 0
    %v509 = vsel %vm300, %v51, 0
    %v512 = vsel %vm300, %v52, 0
    %v515 = vsel %vm300, %v53, 0
    %v518 = vsel %vm300, %v54, 0
    %v521 = vsel %vm300, %v55, 0
    %v524 = vsel %vm300, %v56, 0
    %v527 = vsel %vm300, %v57, 0
    %v530 = vsel %vm300, %v58, 0
    %v533 = vsel %vm300, %v59, 0
    %535 = vmatprep.subr.mxu0 0.0
    %536 = vmatpush1.msra.mxu0 0.0
    %537 = vmatprep.subr.mxu0 0.0
    %538 = vmatpush1.msra.mxu0 0.0
    %539 = vmatprep.subr.mxu0 0.0
    %540 = vmatpush1.msra.mxu0 0.0
    %541 = vmatprep.subr.mxu0 0.0
    %542 = vmatpush1.msra.mxu0 0.0
    %543 = vmatprep.subr.mxu0 0.0
    %544 = vmatpush1.msra.mxu0 0.0
    %545 = vmatprep.subr.mxu0 0.0
    %546 = vmatpush1.msra.mxu0 0.0
    %547 = vmatprep.subr.mxu0 0.0
    %548 = vmatpush1.msra.mxu0 0.0
    %549 = vmatprep.subr.mxu0 0.0
    %550 = vmatpush1.msra.mxu0 0.0
    %551 = vmatprep.subr.mxu0 0.0
    %552 = vmatpush1.msra.mxu0 0.0
    %553 = vmatprep.subr.mxu0 0.0
    %554 = vmatpush1.msra.mxu0 0.0
    %555 = vmatprep.subr.mxu0 0.0
    %556 = vmatpush1.msra.mxu0 0.0
    %557 = vmatprep.subr.mxu0 0.0
    %558 = vmatpush1.msra.mxu0 0.0
    %559 = vmatprep.subr.mxu0 0.0
    %560 = vmatpush1.msra.mxu0 0.0
    %561 = vmatprep.subr.mxu0 0.0
    %562 = vmatpush1.msra.mxu0 0.0
    %563 = vmatprep.subr.mxu0 0.0
    %564 = vmatpush1.msra.mxu0 0.0
    %565 = vmatprep.subr.mxu0 0.0
    %566 = vmatpush1.msra.mxu0 %v474
    %567 = vmatprep.subr.mxu0 0.0
    %568 = vmatpush2.msra.mxu0 0.0
    %569 = vmatprep.subr.mxu0 0.0
    %570 = vmatpush2.msra.mxu0 0.0
    %571 = vmatprep.subr.mxu0 0.0
    %572 = vmatpush2.msra.mxu0 0.0
    %573 = vmatprep.subr.mxu0 0.0
    %574 = vmatpush2.msra.mxu0 0.0
    %575 = vmatprep.subr.mxu0 0.0
    %576 = vmatpush2.msra.mxu0 0.0
    %577 = vmatprep.subr.mxu0 0.0
    %578 = vmatpush2.msra.mxu0 0.0
    %579 = vmatprep.subr.mxu0 0.0
    %580 = vmatpush2.msra.mxu0 0.0
    %581 = vmatprep.subr.mxu0 0.0
    %582 = vmatpush2.msra.mxu0 0.0
    %583 = vmatprep.subr.mxu0 0.0
    %584 = vmatpush2.msra.mxu0 0.0
    %585 = vmatprep.subr.mxu0 0.0
    %586 = vmatpush2.msra.mxu0 0.0
    %587 = vmatprep.subr.mxu0 0.0
    %588 = vmatpush2.msra.mxu0 0.0
    %589 = vmatprep.subr.mxu0 0.0
    %590 = vmatpush2.msra.mxu0 0.0
    %591 = vmatprep.subr.mxu0 0.0
    %592 = vmatpush2.msra.mxu0 0.0
    %593 = vmatprep.subr.mxu0 0.0
    %594 = vmatpush2.msra.mxu0 0.0
    %595 = vmatprep.subr.mxu0 0.0
    %596 = vmatpush2.msra.mxu0 0.0
    %597 = vmatprep.subr.mxu0 0.0
    %598 = vmatpush2.msra.mxu0 0.0
    %599 = vmatprep.mubr.f32.mxu0 0.0
    %600 = vmatmul.mubr.f32.gmra.mxu0 %v476
    %v601 = vpop.f32.mrf.mxu0
    %v602 = vadd.f32 0.0, %v601
    %v603 = vpop.f32.mrf.mxu0
    %604 = vmatprep.mubr.f32.mxu0 0.0
    %605 = vmatmul.mubr.f32.gmra.mxu0 %v479
    %v606 = vpop.f32.mrf.mxu0
    %v607 = vadd.f32 0.0, %v606
    %v608 = vpop.f32.mrf.mxu0
    %609 = vmatprep.mubr.f32.mxu0 0.0
    %610 = vmatmul.mubr.f32.gmra.mxu0 %v482
    %v611 = vpop.f32.mrf.mxu0
    %v612 = vadd.f32 0.0, %v611
    %v613 = vpop.f32.mrf.mxu0
    %614 = vmatprep.mubr.f32.mxu0 0.0
    %615 = vmatmul.mubr.f32.gmra.mxu0 %v485
    %v616 = vpop.f32.mrf.mxu0
    %v617 = vadd.f32 0.0, %v616
    %v618 = vpop.f32.mrf.mxu0
    %619 = vmatprep.mubr.f32.mxu0 0.0
    %620 = vmatmul.mubr.f32.gmra.mxu0 %v488
    %v621 = vpop.f32.mrf.mxu0
    %v622 = vadd.f32 0.0, %v621
    %v623 = vpop.f32.mrf.mxu0
    %624 = vmatprep.mubr.f32.mxu0 0.0
    %625 = vmatmul.mubr.f32.gmra.mxu0 %v491
    %v626 = vpop.f32.mrf.mxu0
    %v627 = vadd.f32 0.0, %v626
    %v628 = vpop.f32.mrf.mxu0
    %629 = vmatprep.mubr.f32.mxu0 0.0
    %630 = vmatmul.mubr.f32.gmra.mxu0 %v494
    %v631 = vpop.f32.mrf.mxu0
    %v632 = vadd.f32 0.0, %v631
    %v633 = vpop.f32.mrf.mxu0
    %634 = vmatprep.mubr.f32.mxu0 0.0
    %635 = vmatmul.mubr.f32.gmra.mxu0 %v497
    %v636 = vpop.f32.mrf.mxu0
    %v637 = vadd.f32 0.0, %v636
    %v638 = vpop.f32.mrf.mxu0
    %639 = vmatprep.mubr.f32.mxu0 0.0
    %640 = vmatmul.mubr.f32.gmra.mxu0 %v500
    %v641 = vpop.f32.mrf.mxu0
    %v642 = vadd.f32 0.0, %v641
    %v643 = vpop.f32.mrf.mxu0
    %644 = vmatprep.mubr.f32.mxu0 0.0
    %645 = vmatmul.mubr.f32.gmra.mxu0 %v503
    %v646 = vpop.f32.mrf.mxu0
    %v647 = vadd.f32 0.0, %v646
    %v648 = vpop.f32.mrf.mxu0
    %649 = vmatprep.mubr.f32.mxu0 0.0
    %650 = vmatmul.mubr.f32.gmra.mxu0 %v506
    %v651 = vpop.f32.mrf.mxu0
    %v652 = vadd.f32 0.0, %v651
    %v653 = vpop.f32.mrf.mxu0
    %654 = vmatprep.mubr.f32.mxu0 0.0
    %655 = vmatmul.mubr.f32.gmra.mxu0 %v509
    %v656 = vpop.f32.mrf.mxu0
    %v657 = vadd.f32 0.0, %v656
    %v658 = vpop.f32.mrf.mxu0
    %659 = vmatprep.mubr.f32.mxu0 0.0
    %660 = vmatmul.mubr.f32.gmra.mxu0 %v512
    %v661 = vpop.f32.mrf.mxu0
    %v662 = vadd.f32 0.0, %v661
    %v663 = vpop.f32.mrf.mxu0
    %664 = vmatprep.mubr.f32.mxu0 0.0
    %665 = vmatmul.mubr.f32.gmra.mxu0 %v515
    %v666 = vpop.f32.mrf.mxu0
    %v667 = vadd.f32 0.0, %v666
    %v668 = vpop.f32.mrf.mxu0
    %669 = vmatprep.mubr.f32.mxu0 0.0
    %670 = vmatmul.mubr.f32.gmra.mxu0 %v518
    %v671 = vpop.f32.mrf.mxu0
    %v672 = vadd.f32 0.0, %v671
    %v673 = vpop.f32.mrf.mxu0
    %674 = vmatprep.mubr.f32.mxu0 0.0
    %675 = vmatmul.mubr.f32.gmra.mxu0 %v521
    %v676 = vpop.f32.mrf.mxu0
    %v677 = vadd.f32 0.0, %v676
    %v678 = vpop.f32.mrf.mxu0
    %679 = vmatprep.mubr.f32.mxu0 0.0
    %680 = vmatmul.mubr.f32.gmra.mxu0 %v524
    %v681 = vpop.f32.mrf.mxu0
    %v682 = vadd.f32 0.0, %v681
    %v683 = vpop.f32.mrf.mxu0
    %684 = vmatprep.mubr.f32.mxu0 0.0
    %685 = vmatmul.mubr.f32.gmra.mxu0 %v527
    %v686 = vpop.f32.mrf.mxu0
    %v687 = vadd.f32 0.0, %v686
    %v688 = vpop.f32.mrf.mxu0
    %689 = vmatprep.mubr.f32.mxu0 0.0
    %690 = vmatmul.mubr.f32.gmra.mxu0 %v530
    %v691 = vpop.f32.mrf.mxu0
    %v692 = vadd.f32 0.0, %v691
    %v693 = vpop.f32.mrf.mxu0
    %694 = vmatprep.mubr.f32.mxu0 0.0
    %695 = vmatmul.mubr.f32.gmra.mxu0 %v533
    %v696 = vpop.f32.mrf.mxu0
    %v697 = vadd.f32 0.0, %v696
    %v698 = vpop.f32.mrf.mxu0
    %699 = vdwg.mxu0
    %vm700 = vcmask 80896
    %v702 = vsel %vm700, %v192, 0
    %v705 = vsel %vm700, %v193, 0
    %v708 = vsel %vm700, %v194, 0
    %v711 = vsel %vm700, %v195, 0
    %v714 = vsel %vm700, %v196, 0
    %v717 = vsel %vm700, %v197, 0
    %v720 = vsel %vm700, %v198, 0
    %v723 = vsel %vm700, %v199, 0
    %v726 = vsel %vm700, %v200, 0
    %v729 = vsel %vm700, %v201, 0
    %v732 = vsel %vm700, %v202, 0
    %v735 = vsel %vm700, %v203, 0
    %v738 = vsel %vm700, %v204, 0
    %v741 = vsel %vm700, %v205, 0
    %v744 = vsel %vm700, %v206, 0
    %v747 = vsel %vm700, %v207, 0
    %v750 = vsel %vm700, %v208, 0
    %v753 = vsel %vm700, %v209, 0
    %v756 = vsel %vm700, %v210, 0
    %v759 = vsel %vm700, %v211, 0
    %vm761 = vcmask 1041408
    %v763 = vsel %vm761, %v471, 0
    %765 = vmatprep.subr.mxu0 0.0
    %766 = vmatpush1.msra.mxu0 0.0
    %767 = vmatprep.subr.mxu0 0.0
    %768 = vmatpush1.msra.mxu0 0.0
    %769 = vmatprep.subr.mxu0 0.0
    %770 = vmatpush1.msra.mxu0 0.0
    %771 = vmatprep.subr.mxu0 0.0
    %772 = vmatpush1.msra.mxu0 0.0
    %773 = vmatprep.subr.mxu0 0.0
    %774 = vmatpush1.msra.mxu0 0.0
    %775 = vmatprep.subr.mxu0 0.0
    %776 = vmatpush1.msra.mxu0 0.0
    %777 = vmatprep.subr.mxu0 0.0
    %778 = vmatpush1.msra.mxu0 0.0
    %779 = vmatprep.subr.mxu0 0.0
    %780 = vmatpush1.msra.mxu0 0.0
    %781 = vmatprep.subr.mxu0 0.0
    %782 = vmatpush1.msra.mxu0 0.0
    %783 = vmatprep.subr.mxu0 0.0
    %784 = vmatpush1.msra.mxu0 0.0
    %785 = vmatprep.subr.mxu0 0.0
    %786 = vmatpush1.msra.mxu0 0.0
    %787 = vmatprep.subr.mxu0 0.0
    %788 = vmatpush1.msra.mxu0 0.0
    %789 = vmatprep.subr.mxu0 0.0
    %790 = vmatpush1.msra.mxu0 0.0
    %791 = vmatprep.subr.mxu0 0.0
    %792 = vmatpush1.msra.mxu0 0.0
    %793 = vmatprep.subr.mxu0 0.0
    %794 = vmatpush1.msra.mxu0 %v763
    %795 = vmatprep.subr.mxu0 0.0
    %796 = vmatpush1.msra.mxu0 %v466
    %797 = vmatprep.subr.mxu0 0.0
    %798 = vmatpush2.msra.mxu0 0.0
    %799 = vmatprep.subr.mxu0 0.0
    %800 = vmatpush2.msra.mxu0 0.0
    %801 = vmatprep.subr.mxu0 0.0
    %802 = vmatpush2.msra.mxu0 0.0
    %803 = vmatprep.subr.mxu0 0.0
    %804 = vmatpush2.msra.mxu0 0.0
    %805 = vmatprep.subr.mxu0 0.0
    %806 = vmatpush2.msra.mxu0 0.0
    %807 = vmatprep.subr.mxu0 0.0
    %808 = vmatpush2.msra.mxu0 0.0
    %809 = vmatprep.subr.mxu0 0.0
    %810 = vmatpush2.msra.mxu0 0.0
    %811 = vmatprep.subr.mxu0 0.0
    %812 = vmatpush2.msra.mxu0 0.0
    %813 = vmatprep.subr.mxu0 0.0
    %814 = vmatpush2.msra.mxu0 0.0
    %815 = vmatprep.subr.mxu0 0.0
    %816 = vmatpush2.msra.mxu0 0.0
    %817 = vmatprep.subr.mxu0 0.0
    %818 = vmatpush2.msra.mxu0 0.0
    %819 = vmatprep.subr.mxu0 0.0
    %820 = vmatpush2.msra.mxu0 0.0
    %821 = vmatprep.subr.mxu0 0.0
    %822 = vmatpush2.msra.mxu0 0.0
    %823 = vmatprep.subr.mxu0 0.0
    %824 = vmatpush2.msra.mxu0 0.0
    %825 = vmatprep.subr.mxu0 0.0
    %826 = vmatpush2.msra.mxu0 0.0
    %827 = vmatprep.subr.mxu0 0.0
    %828 = vmatpush2.msra.mxu0 0.0
    %829 = vmatprep.mubr.f32.mxu0 0.0
    %830 = vmatmul.mubr.f32.gmra.mxu0 %v702
    %v831 = vpop.f32.mrf.mxu0
    %v832 = vadd.f32 %v602, %v831
    %v833 = vpop.f32.mrf.mxu0
    %834 = vmatprep.mubr.f32.mxu0 0.0
    %835 = vmatmul.mubr.f32.gmra.mxu0 %v705
    %v836 = vpop.f32.mrf.mxu0
    %v837 = vadd.f32 %v607, %v836
    %v838 = vpop.f32.mrf.mxu0
    %839 = vmatprep.mubr.f32.mxu0 0.0
    %840 = vmatmul.mubr.f32.gmra.mxu0 %v708
    %v841 = vpop.f32.mrf.mxu0
    %v842 = vadd.f32 %v612, %v841
    %v843 = vpop.f32.mrf.mxu0
    %844 = vmatprep.mubr.f32.mxu0 0.0
    %845 = vmatmul.mubr.f32.gmra.mxu0 %v711
    %v846 = vpop.f32.mrf.mxu0
    %v847 = vadd.f32 %v617, %v846
    %v848 = vpop.f32.mrf.mxu0
    %849 = vmatprep.mubr.f32.mxu0 0.0
    %850 = vmatmul.mubr.f32.gmra.mxu0 %v714
    %v851 = vpop.f32.mrf.mxu0
    %v852 = vadd.f32 %v622, %v851
    %v853 = vpop.f32.mrf.mxu0
    %854 = vmatprep.mubr.f32.mxu0 0.0
    %855 = vmatmul.mubr.f32.gmra.mxu0 %v717
    %v856 = vpop.f32.mrf.mxu0
    %v857 = vadd.f32 %v627, %v856
    %v858 = vpop.f32.mrf.mxu0
    %859 = vmatprep.mubr.f32.mxu0 0.0
    %860 = vmatmul.mubr.f32.gmra.mxu0 %v720
    %v861 = vpop.f32.mrf.mxu0
    %v862 = vadd.f32 %v632, %v861
    %v863 = vpop.f32.mrf.mxu0
    %864 = vmatprep.mubr.f32.mxu0 0.0
    %865 = vmatmul.mubr.f32.gmra.mxu0 %v723
    %v866 = vpop.f32.mrf.mxu0
    %v867 = vadd.f32 %v637, %v866
    %v868 = vpop.f32.mrf.mxu0
    %869 = vmatprep.mubr.f32.mxu0 0.0
    %870 = vmatmul.mubr.f32.gmra.mxu0 %v726
    %v871 = vpop.f32.mrf.mxu0
    %v872 = vadd.f32 %v642, %v871
    %v873 = vpop.f32.mrf.mxu0
    %874 = vmatprep.mubr.f32.mxu0 0.0
    %875 = vmatmul.mubr.f32.gmra.mxu0 %v729
    %v876 = vpop.f32.mrf.mxu0
    %v877 = vadd.f32 %v647, %v876
    %v878 = vpop.f32.mrf.mxu0
    %879 = vmatprep.mubr.f32.mxu0 0.0
    %880 = vmatmul.mubr.f32.gmra.mxu0 %v732
    %v881 = vpop.f32.mrf.mxu0
    %v882 = vadd.f32 %v652, %v881
    %v883 = vpop.f32.mrf.mxu0
    %884 = vmatprep.mubr.f32.mxu0 0.0
    %885 = vmatmul.mubr.f32.gmra.mxu0 %v735
    %v886 = vpop.f32.mrf.mxu0
    %v887 = vadd.f32 %v657, %v886
    %v888 = vpop.f32.mrf.mxu0
    %889 = vmatprep.mubr.f32.mxu0 0.0
    %890 = vmatmul.mubr.f32.gmra.mxu0 %v738
    %v891 = vpop.f32.mrf.mxu0
    %v892 = vadd.f32 %v662, %v891
    %v893 = vpop.f32.mrf.mxu0
    %894 = vmatprep.mubr.f32.mxu0 0.0
    %895 = vmatmul.mubr.f32.gmra.mxu0 %v741
    %v896 = vpop.f32.mrf.mxu0
    %v897 = vadd.f32 %v667, %v896
    %v898 = vpop.f32.mrf.mxu0
    %899 = vmatprep.mubr.f32.mxu0 0.0
    %900 = vmatmul.mubr.f32.gmra.mxu0 %v744
    %v901 = vpop.f32.mrf.mxu0
    %v902 = vadd.f32 %v672, %v901
    %v903 = vpop.f32.mrf.mxu0
    %904 = vmatprep.mubr.f32.mxu0 0.0
    %905 = vmatmul.mubr.f32.gmra.mxu0 %v747
    %v906 = vpop.f32.mrf.mxu0
    %v907 = vadd.f32 %v677, %v906
    %v908 = vpop.f32.mrf.mxu0
    %909 = vmatprep.mubr.f32.mxu0 0.0
    %910 = vmatmul.mubr.f32.gmra.mxu0 %v750
    %v911 = vpop.f32.mrf.mxu0
    %v912 = vadd.f32 %v682, %v911
    %v913 = vpop.f32.mrf.mxu0
    %914 = vmatprep.mubr.f32.mxu0 0.0
    %915 = vmatmul.mubr.f32.gmra.mxu0 %v753
    %v916 = vpop.f32.mrf.mxu0
    %v917 = vadd.f32 %v687, %v916
    %v918 = vpop.f32.mrf.mxu0
    %919 = vmatprep.mubr.f32.mxu0 0.0
    %920 = vmatmul.mubr.f32.gmra.mxu0 %v756
    %v921 = vpop.f32.mrf.mxu0
    %v922 = vadd.f32 %v692, %v921
    %v923 = vpop.f32.mrf.mxu0
    %924 = vmatprep.mubr.f32.mxu0 0.0
    %925 = vmatmul.mubr.f32.gmra.mxu0 %v759
    %v926 = vpop.f32.mrf.mxu0
    %v927 = vadd.f32 %v697, %v926
    %v928 = vpop.f32.mrf.mxu0
    %929 = vdwg.mxu0
    %v930 = vld [vmem:[#allocation5 + $0x50] sm:$0x1]
    %v931 = vlaneseq
    %v932 = vshrl.u32 %v931, 7
    %v933 = vsub.s32 0, %v932
    %v934 = vrot.slane %v930, %v933
    %v935 = vadd.f32 %v832, %v934
    %v936 = vadd.f32 %v837, %v934
    %v937 = vadd.f32 %v842, %v934
    %v938 = vadd.f32 %v847, %v934
    %v939 = vadd.f32 %v852, %v934
    %v940 = vadd.f32 %v857, %v934
    %v941 = vadd.f32 %v862, %v934
    %v942 = vadd.f32 %v867, %v934
    %v943 = vadd.f32 %v872, %v934
    %v944 = vadd.f32 %v877, %v934
    %v945 = vadd.f32 %v882, %v934
    %v946 = vadd.f32 %v887, %v934
    %v947 = vadd.f32 %v892, %v934
    %v948 = vadd.f32 %v897, %v934
    %v949 = vadd.f32 %v902, %v934
    %v950 = vadd.f32 %v907, %v934
    %v951 = vadd.f32 %v912, %v934
    %v952 = vadd.f32 %v917, %v934
    %v953 = vadd.f32 %v922, %v934
    %v954 = vadd.f32 %v927, %v934
    %v955 = vmax.f32 %v935, 0.0
    %v956 = vmax.f32 %v936, 0.0
    %v957 = vmax.f32 %v937, 0.0
    %v958 = vmax.f32 %v938, 0.0
    %v959 = vmax.f32 %v939, 0.0
    %v960 = vmax.f32 %v940, 0.0
    %v961 = vmax.f32 %v941, 0.0
    %v962 = vmax.f32 %v942, 0.0
    %v963 = vmax.f32 %v943, 0.0
    %v964 = vmax.f32 %v944, 0.0
    %v965 = vmax.f32 %v945, 0.0
    %v966 = vmax.f32 %v946, 0.0
    %v967 = vmax.f32 %v947, 0.0
    %v968 = vmax.f32 %v948, 0.0
    %v969 = vmax.f32 %v949, 0.0
    %v970 = vmax.f32 %v950, 0.0
    %v971 = vmax.f32 %v951, 0.0
    %v972 = vmax.f32 %v952, 0.0
    %v973 = vmax.f32 %v953, 0.0
    %v974 = vmax.f32 %v954, 0.0
    %v975 = vadd.f32 %v955, %v959
    %v976 = vadd.f32 %v956, %v960
    %v977 = vadd.f32 %v957, %v961
    %v978 = vadd.f32 %v958, %v962
    %v979 = vadd.f32 %v975, %v963
    %v980 = vadd.f32 %v976, %v964
    %v981 = vadd.f32 %v977, %v965
    %v982 = vadd.f32 %v978, %v966
    %v983 = vadd.f32 %v979, %v967
    %v984 = vadd.f32 %v980, %v968
    %v985 = vadd.f32 %v981, %v969
    %v986 = vadd.f32 %v982, %v970
    %v987 = vadd.f32 %v983, %v971
    %v988 = vadd.f32 %v984, %v972
    %v989 = vadd.f32 %v985, %v973
    %v990 = vadd.f32 %v986, %v974
    %v991 = vld [vmem:[#allocation5 + $0x60] sm:$0xff]
    %v992 = vld [vmem:[#allocation5 + $0x68] sm:$0xff]
    %v993 = vld [vmem:[#allocation5 + $0x70] sm:$0xff]
    %v994 = vld [vmem:[#allocation5 + $0x78] sm:$0xff]
    %v995 = vld [vmem:[#allocation5 + $0x80] sm:$0xff]
    %v996 = vld [vmem:[#allocation5 + $0x88] sm:$0xff]
    %v997 = vld [vmem:[#allocation5 + $0x90] sm:$0xff]
    %v998 = vld [vmem:[#allocation5 + $0x98] sm:$0xff]
    %v999 = vld [vmem:[#allocation5 + $0xa0] sm:$0xff]
    %v1000 = vld [vmem:[#allocation5 + $0xa8] sm:$0xff]
    %v1001 = vld [vmem:[#allocation5 + $0xb0] sm:$0xff]
    %v1002 = vld [vmem:[#allocation5 + $0xb8] sm:$0xff]
    %v1003 = vld [vmem:[#allocation5 + $0xc0] sm:$0xff]
    %v1004 = vld [vmem:[#allocation5 + $0xc8] sm:$0xff]
    %v1005 = vld [vmem:[#allocation5 + $0xd0] sm:$0xff]
    %v1006 = vld [vmem:[#allocation5 + $0xd8] sm:$0xff]
    %v1007 = vld [vmem:[#allocation5 + $0xe0] sm:$0x1]
    %v1008 = vlaneseq
    %v1009 = vshrl.u32 %v1008, 7
    %v1010 = vsub.s32 0, %v1009
    %v1011 = vrot.slane %v1007, %v1010
    %1012 = vmatprep.subr.mxu0 0.0
    %1013 = vmatpush1.msra.mxu0 %v1006
    %1014 = vmatprep.subr.mxu0 0.0
    %1015 = vmatpush1.msra.mxu0 %v1005
    %1016 = vmatprep.subr.mxu0 0.0
    %1017 = vmatpush1.msra.mxu0 %v1004
    %1018 = vmatprep.subr.mxu0 0.0
    %1019 = vmatpush1.msra.mxu0 %v1003
    %1020 = vmatprep.subr.mxu0 0.0
    %1021 = vmatpush1.msra.mxu0 %v1002
    %1022 = vmatprep.subr.mxu0 0.0
    %1023 = vmatpush1.msra.mxu0 %v1001
    %1024 = vmatprep.subr.mxu0 0.0
    %1025 = vmatpush1.msra.mxu0 %v1000
    %1026 = vmatprep.subr.mxu0 0.0
    %1027 = vmatpush1.msra.mxu0 %v999
    %1028 = vmatprep.subr.mxu0 0.0
    %1029 = vmatpush1.msra.mxu0 %v998
    %1030 = vmatprep.subr.mxu0 0.0
    %1031 = vmatpush1.msra.mxu0 %v997
    %1032 = vmatprep.subr.mxu0 0.0
    %1033 = vmatpush1.msra.mxu0 %v996
    %1034 = vmatprep.subr.mxu0 0.0
    %1035 = vmatpush1.msra.mxu0 %v995
    %1036 = vmatprep.subr.mxu0 0.0
    %1037 = vmatpush1.msra.mxu0 %v994
    %1038 = vmatprep.subr.mxu0 0.0
    %1039 = vmatpush1.msra.mxu0 %v993
    %1040 = vmatprep.subr.mxu0 0.0
    %1041 = vmatpush1.msra.mxu0 %v992
    %1042 = vmatprep.subr.mxu0 0.0
    %1043 = vmatpush1.msra.mxu0 %v991
    %1044 = vmatprep.subr.mxu0 0.0
    %1045 = vmatpush2.msra.mxu0 0.0
    %1046 = vmatprep.subr.mxu0 0.0
    %1047 = vmatpush2.msra.mxu0 0.0
    %1048 = vmatprep.subr.mxu0 0.0
    %1049 = vmatpush2.msra.mxu0 0.0
    %1050 = vmatprep.subr.mxu0 0.0
    %1051 = vmatpush2.msra.mxu0 0.0
    %1052 = vmatprep.subr.mxu0 0.0
    %1053 = vmatpush2.msra.mxu0 0.0
    %1054 = vmatprep.subr.mxu0 0.0
    %1055 = vmatpush2.msra.mxu0 0.0
    %1056 = vmatprep.subr.mxu0 0.0
    %1057 = vmatpush2.msra.mxu0 0.0
    %1058 = vmatprep.subr.mxu0 0.0
    %1059 = vmatpush2.msra.mxu0 0.0
    %1060 = vmatprep.subr.mxu0 0.0
    %1061 = vmatpush2.msra.mxu0 0.0
    %1062 = vmatprep.subr.mxu0 0.0
    %1063 = vmatpush2.msra.mxu0 0.0
    %1064 = vmatprep.subr.mxu0 0.0
    %1065 = vmatpush2.msra.mxu0 0.0
    %1066 = vmatprep.subr.mxu0 0.0
    %1067 = vmatpush2.msra.mxu0 0.0
    %1068 = vmatprep.subr.mxu0 0.0
    %1069 = vmatpush2.msra.mxu0 0.0
    %1070 = vmatprep.subr.mxu0 0.0
    %1071 = vmatpush2.msra.mxu0 0.0
    %1072 = vmatprep.subr.mxu0 0.0
    %1073 = vmatpush2.msra.mxu0 0.0
    %1074 = vmatprep.subr.mxu0 0.0
    %1075 = vmatpush2.msra.mxu0 0.0
    %1076 = vmatprep.mubr.f32.mxu0 0.0
    %1077 = vmatmul.mubr.f32.gmra.mxu0 %v987
    %v1078 = vpop.f32.mrf.mxu0
    %v1079 = vadd.f32 %v1011, %v1078
    %v1080 = vpop.f32.mrf.mxu0
    %1081 = vmatprep.mubr.f32.mxu0 0.0
    %1082 = vmatmul.mubr.f32.gmra.mxu0 %v988
    %v1083 = vpop.f32.mrf.mxu0
    %v1084 = vadd.f32 %v1011, %v1083
    %v1085 = vpop.f32.mrf.mxu0
    %1086 = vmatprep.mubr.f32.mxu0 0.0
    %1087 = vmatmul.mubr.f32.gmra.mxu0 %v989
    %v1088 = vpop.f32.mrf.mxu0
    %v1089 = vadd.f32 %v1011, %v1088
    %v1090 = vpop.f32.mrf.mxu0
    %1091 = vmatprep.mubr.f32.mxu0 0.0
    %1092 = vmatmul.mubr.f32.gmra.mxu0 %v990
    %v1093 = vpop.f32.mrf.mxu0
    %v1094 = vadd.f32 %v1011, %v1093
    %v1095 = vpop.f32.mrf.mxu0
    %1096 = vdwg.mxu0
    %v1097 = vmax.f32 %v1079, 0.0
    %v1098 = vmax.f32 %v1084, 0.0
    %v1099 = vmax.f32 %v1089, 0.0
    %v1100 = vmax.f32 %v1094, 0.0
    %v1102 = vsel %vm212, %v88, 0
    %1104 = vmatprep.subr.mxu0 0.0
    %1105 = vmatpush1.msra.mxu0 0.0
    %1106 = vmatprep.subr.mxu0 0.0
    %1107 = vmatpush1.msra.mxu0 0.0
    %1108 = vmatprep.subr.mxu0 0.0
    %1109 = vmatpush1.msra.mxu0 0.0
    %1110 = vmatprep.subr.mxu0 0.0
    %1111 = vmatpush1.msra.mxu0 0.0
    %1112 = vmatprep.subr.mxu0 0.0
    %1113 = vmatpush1.msra.mxu0 0.0
    %1114 = vmatprep.subr.mxu0 0.0
    %1115 = vmatpush1.msra.mxu0 0.0
    %1116 = vmatprep.subr.mxu0 0.0
    %1117 = vmatpush1.msra.mxu0 0.0
    %1118 = vmatprep.subr.mxu0 0.0
    %1119 = vmatpush1.msra.mxu0 0.0
    %1120 = vmatprep.subr.mxu0 0.0
    %1121 = vmatpush1.msra.mxu0 0.0
    %1122 = vmatprep.subr.mxu0 0.0
    %1123 = vmatpush1.msra.mxu0 0.0
    %1124 = vmatprep.subr.mxu0 0.0
    %1125 = vmatpush1.msra.mxu0 0.0
    %1126 = vmatprep.subr.mxu0 0.0
    %1127 = vmatpush1.msra.mxu0 0.0
    %1128 = vmatprep.subr.mxu0 0.0
    %1129 = vmatpush1.msra.mxu0 %v1100
    %1130 = vmatprep.subr.mxu0 0.0
    %1131 = vmatpush1.msra.mxu0 %v1099
    %1132 = vmatprep.subr.mxu0 0.0
    %1133 = vmatpush1.msra.mxu0 %v1098
    %1134 = vmatprep.subr.mxu0 0.0
    %1135 = vmatpush1.msra.mxu0 %v1097
    %1136 = vmatprep.subr.mxu0 0.0
    %1137 = vmatpush2.msra.mxu0 0.0
    %1138 = vmatprep.subr.mxu0 0.0
    %1139 = vmatpush2.msra.mxu0 0.0
    %1140 = vmatprep.subr.mxu0 0.0
    %1141 = vmatpush2.msra.mxu0 0.0
    %1142 = vmatprep.subr.mxu0 0.0
    %1143 = vmatpush2.msra.mxu0 0.0
    %1144 = vmatprep.subr.mxu0 0.0
    %1145 = vmatpush2.msra.mxu0 0.0
    %1146 = vmatprep.subr.mxu0 0.0
    %1147 = vmatpush2.msra.mxu0 0.0
    %1148 = vmatprep.subr.mxu0 0.0
    %1149 = vmatpush2.msra.mxu0 0.0
    %1150 = vmatprep.subr.mxu0 0.0
    %1151 = vmatpush2.msra.mxu0 0.0
    %1152 = vmatprep.subr.mxu0 0.0
    %1153 = vmatpush2.msra.mxu0 0.0
    %1154 = vmatprep.subr.mxu0 0.0
    %1155 = vmatpush2.msra.mxu0 0.0
    %1156 = vmatprep.subr.mxu0 0.0
    %1157 = vmatpush2.msra.mxu0 0.0
    %1158 = vmatprep.subr.mxu0 0.0
    %1159 = vmatpush2.msra.mxu0 0.0
    %1160 = vmatprep.subr.mxu0 0.0
    %1161 = vmatpush2.msra.mxu0 0.0
    %1162 = vmatprep.subr.mxu0 0.0
    %1163 = vmatpush2.msra.mxu0 0.0
    %1164 = vmatprep.subr.mxu0 0.0
    %1165 = vmatpush2.msra.mxu0 0.0
    %1166 = vmatprep.subr.mxu0 0.0
    %1167 = vmatpush2.msra.mxu0 0.0
    %1168 = vmatprep.mubr.f32.mxu0 0.0
    %1169 = vmatmul.mubr.f32.gmra.mxu0 %v1102
    %v1170 = vpop.f32.mrf.mxu0
    %v1171 = vadd.f32 0.0, %v1170
    %v1172 = vpop.f32.mrf.mxu0
    %1173 = vdwg.mxu0
    %v1174 = vld [vmem:[#allocation5 + $0xe8] sm:$0xff]
    %v1175 = vld [vmem:[#allocation5 + $0xf0] sm:$0xff]
    %v1176 = vld [vmem:[#allocation5 + $0xf8] sm:$0xff]
    %v1177 = vld [vmem:[#allocation5 + $0x100] sm:$0xff]
    %v1179 = vsel %vm212, %v1171, 0
    %1181 = vmatprep.subr.mxu0 0.0
    %1182 = vmatpush1.msra.mxu0 0.0
    %1183 = vmatprep.subr.mxu0 0.0
    %1184 = vmatpush1.msra.mxu0 0.0
    %1185 = vmatprep.subr.mxu0 0.0
    %1186 = vmatpush1.msra.mxu0 0.0
    %1187 = vmatprep.subr.mxu0 0.0
    %1188 = vmatpush1.msra.mxu0 0.0
    %1189 = vmatprep.subr.mxu0 0.0
    %1190 = vmatpush1.msra.mxu0 0.0
    %1191 = vmatprep.subr.mxu0 0.0
    %1192 = vmatpush1.msra.mxu0 0.0
    %1193 = vmatprep.subr.mxu0 0.0
    %1194 = vmatpush1.msra.mxu0 0.0
    %1195 = vmatprep.subr.mxu0 0.0
    %1196 = vmatpush1.msra.mxu0 0.0
    %1197 = vmatprep.subr.mxu0 0.0
    %1198 = vmatpush1.msra.mxu0 0.0
    %1199 = vmatprep.subr.mxu0 0.0
    %1200 = vmatpush1.msra.mxu0 0.0
    %1201 = vmatprep.subr.mxu0 0.0
    %1202 = vmatpush1.msra.mxu0 0.0
    %1203 = vmatprep.subr.mxu0 0.0
    %1204 = vmatpush1.msra.mxu0 0.0
    %1205 = vmatprep.subr.mxu0 0.0
    %1206 = vmatpush1.msra.mxu0 %v1177
    %1207 = vmatprep.subr.mxu0 0.0
    %1208 = vmatpush1.msra.mxu0 %v1176
    %1209 = vmatprep.subr.mxu0 0.0
    %1210 = vmatpush1.msra.mxu0 %v1175
    %1211 = vmatprep.subr.mxu0 0.0
    %1212 = vmatpush1.msra.mxu0 %v1174
    %1213 = vmatprep.subr.mxu0 0.0
    %1214 = vmatpush2.msra.mxu0 0.0
    %1215 = vmatprep.subr.mxu0 0.0
    %1216 = vmatpush2.msra.mxu0 0.0
    %1217 = vmatprep.subr.mxu0 0.0
    %1218 = vmatpush2.msra.mxu0 0.0
    %1219 = vmatprep.subr.mxu0 0.0
    %1220 = vmatpush2.msra.mxu0 0.0
    %1221 = vmatprep.subr.mxu0 0.0
    %1222 = vmatpush2.msra.mxu0 0.0
    %1223 = vmatprep.subr.mxu0 0.0
    %1224 = vmatpush2.msra.mxu0 0.0
    %1225 = vmatprep.subr.mxu0 0.0
    %1226 = vmatpush2.msra.mxu0 0.0
    %1227 = vmatprep.subr.mxu0 0.0
    %1228 = vmatpush2.msra.mxu0 0.0
    %1229 = vmatprep.subr.mxu0 0.0
    %1230 = vmatpush2.msra.mxu0 0.0
    %1231 = vmatprep.subr.mxu0 0.0
    %1232 = vmatpush2.msra.mxu0 0.0
    %1233 = vmatprep.subr.mxu0 0.0
    %1234 = vmatpush2.msra.mxu0 0.0
    %1235 = vmatprep.subr.mxu0 0.0
    %1236 = vmatpush2.msra.mxu0 0.0
    %1237 = vmatprep.subr.mxu0 0.0
    %1238 = vmatpush2.msra.mxu0 0.0
    %1239 = vmatprep.subr.mxu0 0.0
    %1240 = vmatpush2.msra.mxu0 0.0
    %1241 = vmatprep.subr.mxu0 0.0
    %1242 = vmatpush2.msra.mxu0 0.0
    %1243 = vmatprep.subr.mxu0 0.0
    %1244 = vmatpush2.msra.mxu0 0.0
    %1245 = vmatprep.mubr.f32.mxu0 0.0
    %1246 = vmatmul.mubr.f32.gmra.mxu0 %v1179
    %v1247 = vpop.f32.mrf.mxu0
    %v1248 = vadd.f32 0.0, %v1247
    %v1249 = vpop.f32.mrf.mxu0
    %1250 = vdwg.mxu0
    %v1251 = vld [vmem:[#allocation5 + $0x1c8] sm:$0xff]
    %v1252 = vld [vmem:[#allocation5 + $0x1d0] sm:$0x1]
    %v1253 = vlaneseq
    %v1254 = vshrl.u32 %v1253, 7
    %v1255 = vsub.s32 0, %v1254
    %v1256 = vrot.slane %v1252, %v1255
    %v1258 = vsel %vm300, %v60, 0
    %1260 = vmatprep.subr.mxu0 0.0
    %1261 = vmatpush1.msra.mxu0 0.0
    %1262 = vmatprep.subr.mxu0 0.0
    %1263 = vmatpush1.msra.mxu0 0.0
    %1264 = vmatprep.subr.mxu0 0.0
    %1265 = vmatpush1.msra.mxu0 0.0
    %1266 = vmatprep.subr.mxu0 0.0
    %1267 = vmatpush1.msra.mxu0 0.0
    %1268 = vmatprep.subr.mxu0 0.0
    %1269 = vmatpush1.msra.mxu0 0.0
    %1270 = vmatprep.subr.mxu0 0.0
    %1271 = vmatpush1.msra.mxu0 0.0
    %1272 = vmatprep.subr.mxu0 0.0
    %1273 = vmatpush1.msra.mxu0 0.0
    %1274 = vmatprep.subr.mxu0 0.0
    %1275 = vmatpush1.msra.mxu0 0.0
    %1276 = vmatprep.subr.mxu0 0.0
    %1277 = vmatpush1.msra.mxu0 0.0
    %1278 = vmatprep.subr.mxu0 0.0
    %1279 = vmatpush1.msra.mxu0 0.0
    %1280 = vmatprep.subr.mxu0 0.0
    %1281 = vmatpush1.msra.mxu0 0.0
    %1282 = vmatprep.subr.mxu0 0.0
    %1283 = vmatpush1.msra.mxu0 0.0
    %1284 = vmatprep.subr.mxu0 0.0
    %1285 = vmatpush1.msra.mxu0 0.0
    %1286 = vmatprep.subr.mxu0 0.0
    %1287 = vmatpush1.msra.mxu0 0.0
    %1288 = vmatprep.subr.mxu0 0.0
    %1289 = vmatpush1.msra.mxu0 0.0
    %1290 = vmatprep.subr.mxu0 0.0
    %1291 = vmatpush1.msra.mxu0 %v1251
    %1292 = vmatprep.subr.mxu0 0.0
    %1293 = vmatpush2.msra.mxu0 0.0
    %1294 = vmatprep.subr.mxu0 0.0
    %1295 = vmatpush2.msra.mxu0 0.0
    %1296 = vmatprep.subr.mxu0 0.0
    %1297 = vmatpush2.msra.mxu0 0.0
    %1298 = vmatprep.subr.mxu0 0.0
    %1299 = vmatpush2.msra.mxu0 0.0
    %1300 = vmatprep.subr.mxu0 0.0
    %1301 = vmatpush2.msra.mxu0 0.0
    %1302 = vmatprep.subr.mxu0 0.0
    %1303 = vmatpush2.msra.mxu0 0.0
    %1304 = vmatprep.subr.mxu0 0.0
    %1305 = vmatpush2.msra.mxu0 0.0
    %1306 = vmatprep.subr.mxu0 0.0
    %1307 = vmatpush2.msra.mxu0 0.0
    %1308 = vmatprep.subr.mxu0 0.0
    %1309 = vmatpush2.msra.mxu0 0.0
    %1310 = vmatprep.subr.mxu0 0.0
    %1311 = vmatpush2.msra.mxu0 0.0
    %1312 = vmatprep.subr.mxu0 0.0
    %1313 = vmatpush2.msra.mxu0 0.0
    %1314 = vmatprep.subr.mxu0 0.0
    %1315 = vmatpush2.msra.mxu0 0.0
    %1316 = vmatprep.subr.mxu0 0.0
    %1317 = vmatpush2.msra.mxu0 0.0
    %1318 = vmatprep.subr.mxu0 0.0
    %1319 = vmatpush2.msra.mxu0 0.0
    %1320 = vmatprep.subr.mxu0 0.0
    %1321 = vmatpush2.msra.mxu0 0.0
    %1322 = vmatprep.subr.mxu0 0.0
    %1323 = vmatpush2.msra.mxu0 0.0
    %1324 = vmatprep.mubr.f32.mxu0 0.0
    %1325 = vmatmul.mubr.f32.gmra.mxu0 %v1258
    %v1326 = vpop.f32.mrf.mxu0
    %v1327 = vadd.f32 %v1256, %v1326
    %v1328 = vpop.f32.mrf.mxu0
    %1329 = vdwg.mxu0
    %v1330 = vld [vmem:[#allocation5 + $0x108] sm:$0xff]
    %v1331 = vld [vmem:[#allocation5 + $0x110] sm:$0xff]
    %v1332 = vld [vmem:[#allocation5 + $0x118] sm:$0xff]
    %v1333 = vld [vmem:[#allocation5 + $0x120] sm:$0xff]
    %v1335 = vsel %vm212, %v1327, 0
    %1337 = vmatprep.subr.mxu0 0.0
    %1338 = vmatpush1.msra.mxu0 0.0
    %1339 = vmatprep.subr.mxu0 0.0
    %1340 = vmatpush1.msra.mxu0 0.0
    %1341 = vmatprep.subr.mxu0 0.0
    %1342 = vmatpush1.msra.mxu0 0.0
    %1343 = vmatprep.subr.mxu0 0.0
    %1344 = vmatpush1.msra.mxu0 0.0
    %1345 = vmatprep.subr.mxu0 0.0
    %1346 = vmatpush1.msra.mxu0 0.0
    %1347 = vmatprep.subr.mxu0 0.0
    %1348 = vmatpush1.msra.mxu0 0.0
    %1349 = vmatprep.subr.mxu0 0.0
    %1350 = vmatpush1.msra.mxu0 0.0
    %1351 = vmatprep.subr.mxu0 0.0
    %1352 = vmatpush1.msra.mxu0 0.0
    %1353 = vmatprep.subr.mxu0 0.0
    %1354 = vmatpush1.msra.mxu0 0.0
    %1355 = vmatprep.subr.mxu0 0.0
    %1356 = vmatpush1.msra.mxu0 0.0
    %1357 = vmatprep.subr.mxu0 0.0
    %1358 = vmatpush1.msra.mxu0 0.0
    %1359 = vmatprep.subr.mxu0 0.0
    %1360 = vmatpush1.msra.mxu0 0.0
    %1361 = vmatprep.subr.mxu0 0.0
    %1362 = vmatpush1.msra.mxu0 %v1333
    %1363 = vmatprep.subr.mxu0 0.0
    %1364 = vmatpush1.msra.mxu0 %v1332
    %1365 = vmatprep.subr.mxu0 0.0
    %1366 = vmatpush1.msra.mxu0 %v1331
    %1367 = vmatprep.subr.mxu0 0.0
    %1368 = vmatpush1.msra.mxu0 %v1330
    %1369 = vmatprep.subr.mxu0 0.0
    %1370 = vmatpush2.msra.mxu0 0.0
    %1371 = vmatprep.subr.mxu0 0.0
    %1372 = vmatpush2.msra.mxu0 0.0
    %1373 = vmatprep.subr.mxu0 0.0
    %1374 = vmatpush2.msra.mxu0 0.0
    %1375 = vmatprep.subr.mxu0 0.0
    %1376 = vmatpush2.msra.mxu0 0.0
    %1377 = vmatprep.subr.mxu0 0.0
    %1378 = vmatpush2.msra.mxu0 0.0
    %1379 = vmatprep.subr.mxu0 0.0
    %1380 = vmatpush2.msra.mxu0 0.0
    %1381 = vmatprep.subr.mxu0 0.0
    %1382 = vmatpush2.msra.mxu0 0.0
    %1383 = vmatprep.subr.mxu0 0.0
    %1384 = vmatpush2.msra.mxu0 0.0
    %1385 = vmatprep.subr.mxu0 0.0
    %1386 = vmatpush2.msra.mxu0 0.0
    %1387 = vmatprep.subr.mxu0 0.0
    %1388 = vmatpush2.msra.mxu0 0.0
    %1389 = vmatprep.subr.mxu0 0.0
    %1390 = vmatpush2.msra.mxu0 0.0
    %1391 = vmatprep.subr.mxu0 0.0
    %1392 = vmatpush2.msra.mxu0 0.0
    %1393 = vmatprep.subr.mxu0 0.0
    %1394 = vmatpush2.msra.mxu0 0.0
    %1395 = vmatprep.subr.mxu0 0.0
    %1396 = vmatpush2.msra.mxu0 0.0
    %1397 = vmatprep.subr.mxu0 0.0
    %1398 = vmatpush2.msra.mxu0 0.0
    %1399 = vmatprep.subr.mxu0 0.0
    %1400 = vmatpush2.msra.mxu0 0.0
    %1401 = vmatprep.mubr.f32.mxu0 0.0
    %1402 = vmatmul.mubr.f32.gmra.mxu0 %v1335
    %v1403 = vpop.f32.mrf.mxu0
    %v1404 = vadd.f32 %v1248, %v1403
    %v1405 = vpop.f32.mrf.mxu0
    %1406 = vdwg.mxu0
    %v1407 = vld [vmem:[#allocation5 + $0x128] sm:$0x1]
    %v1408 = vlaneseq
    %v1409 = vshrl.u32 %v1408, 7
    %v1410 = vsub.s32 0, %v1409
    %v1411 = vrot.slane %v1407, %v1410
    %v1412 = vadd.f32 %v1404, %v1411
    %v1413 = vmax.f32 %v1412, 0.0
    %v1414 = vld [vmem:[#allocation5 + $0x130] sm:$0xff]
    %v1415 = vld [vmem:[#allocation5 + $0x138] sm:$0xff]
    %v1416 = vld [vmem:[#allocation5 + $0x140] sm:$0xff]
    %v1417 = vld [vmem:[#allocation5 + $0x148] sm:$0xff]
    %v1418 = vld [vmem:[#allocation5 + $0x150] sm:$0x1]
    %v1419 = vlaneseq
    %v1420 = vshrl.u32 %v1419, 7
    %v1421 = vsub.s32 0, %v1420
    %v1422 = vrot.slane %v1418, %v1421
    %v1424 = vsel %vm212, %v1413, 0
    %1426 = vmatprep.subr.mxu0 0.0
    %1427 = vmatpush1.msra.mxu0 0.0
    %1428 = vmatprep.subr.mxu0 0.0
    %1429 = vmatpush1.msra.mxu0 0.0
    %1430 = vmatprep.subr.mxu0 0.0
    %1431 = vmatpush1.msra.mxu0 0.0
    %1432 = vmatprep.subr.mxu0 0.0
    %1433 = vmatpush1.msra.mxu0 0.0
    %1434 = vmatprep.subr.mxu0 0.0
    %1435 = vmatpush1.msra.mxu0 0.0
    %1436 = vmatprep.subr.mxu0 0.0
    %1437 = vmatpush1.msra.mxu0 0.0
    %1438 = vmatprep.subr.mxu0 0.0
    %1439 = vmatpush1.msra.mxu0 0.0
    %1440 = vmatprep.subr.mxu0 0.0
    %1441 = vmatpush1.msra.mxu0 0.0
    %1442 = vmatprep.subr.mxu0 0.0
    %1443 = vmatpush1.msra.mxu0 0.0
    %1444 = vmatprep.subr.mxu0 0.0
    %1445 = vmatpush1.msra.mxu0 0.0
    %1446 = vmatprep.subr.mxu0 0.0
    %1447 = vmatpush1.msra.mxu0 0.0
    %1448 = vmatprep.subr.mxu0 0.0
    %1449 = vmatpush1.msra.mxu0 0.0
    %1450 = vmatprep.subr.mxu0 0.0
    %1451 = vmatpush1.msra.mxu0 %v1417
    %1452 = vmatprep.subr.mxu0 0.0
    %1453 = vmatpush1.msra.mxu0 %v1416
    %1454 = vmatprep.subr.mxu0 0.0
    %1455 = vmatpush1.msra.mxu0 %v1415
    %1456 = vmatprep.subr.mxu0 0.0
    %1457 = vmatpush1.msra.mxu0 %v1414
    %1458 = vmatprep.subr.mxu0 0.0
    %1459 = vmatpush2.msra.mxu0 0.0
    %1460 = vmatprep.subr.mxu0 0.0
    %1461 = vmatpush2.msra.mxu0 0.0
    %1462 = vmatprep.subr.mxu0 0.0
    %1463 = vmatpush2.msra.mxu0 0.0
    %1464 = vmatprep.subr.mxu0 0.0
    %1465 = vmatpush2.msra.mxu0 0.0
    %1466 = vmatprep.subr.mxu0 0.0
    %1467 = vmatpush2.msra.mxu0 0.0
    %1468 = vmatprep.subr.mxu0 0.0
    %1469 = vmatpush2.msra.mxu0 0.0
    %1470 = vmatprep.subr.mxu0 0.0
    %1471 = vmatpush2.msra.mxu0 0.0
    %1472 = vmatprep.subr.mxu0 0.0
    %1473 = vmatpush2.msra.mxu0 0.0
    %1474 = vmatprep.subr.mxu0 0.0
    %1475 = vmatpush2.msra.mxu0 0.0
    %1476 = vmatprep.subr.mxu0 0.0
    %1477 = vmatpush2.msra.mxu0 0.0
    %1478 = vmatprep.subr.mxu0 0.0
    %1479 = vmatpush2.msra.mxu0 0.0
    %1480 = vmatprep.subr.mxu0 0.0
    %1481 = vmatpush2.msra.mxu0 0.0
    %1482 = vmatprep.subr.mxu0 0.0
    %1483 = vmatpush2.msra.mxu0 0.0
    %1484 = vmatprep.subr.mxu0 0.0
    %1485 = vmatpush2.msra.mxu0 0.0
    %1486 = vmatprep.subr.mxu0 0.0
    %1487 = vmatpush2.msra.mxu0 0.0
    %1488 = vmatprep.subr.mxu0 0.0
    %1489 = vmatpush2.msra.mxu0 0.0
    %1490 = vmatprep.mubr.f32.mxu0 0.0
    %1491 = vmatmul.mubr.f32.gmra.mxu0 %v1424
    %v1492 = vpop.f32.mrf.mxu0
    %v1493 = vadd.f32 %v1422, %v1492
    %v1494 = vpop.f32.mrf.mxu0
    %1495 = vdwg.mxu0
    %v1496 = vld [vmem:[#allocation5 + $0x158] sm:$0xff]
    %v1497 = vld [vmem:[#allocation5 + $0x160] sm:$0xff]
    %v1498 = vld [vmem:[#allocation5 + $0x168] sm:$0xff]
    %v1499 = vld [vmem:[#allocation5 + $0x170] sm:$0x1]
    %v1500 = vlaneseq
    %v1501 = vshrl.u32 %v1500, 7
    %v1502 = vsub.s32 0, %v1501
    %v1503 = vrot.slane %v1499, %v1502
    %vm1504 = vcmask 195584
    %v1506 = vsel %vm1504, %v61, 0
    %1508 = vmatprep.subr.mxu0 0.0
    %1509 = vmatpush1.msra.mxu0 0.0
    %1510 = vmatprep.subr.mxu0 0.0
    %1511 = vmatpush1.msra.mxu0 0.0
    %1512 = vmatprep.subr.mxu0 0.0
    %1513 = vmatpush1.msra.mxu0 0.0
    %1514 = vmatprep.subr.mxu0 0.0
    %1515 = vmatpush1.msra.mxu0 0.0
    %1516 = vmatprep.subr.mxu0 0.0
    %1517 = vmatpush1.msra.mxu0 0.0
    %1518 = vmatprep.subr.mxu0 0.0
    %1519 = vmatpush1.msra.mxu0 0.0
    %1520 = vmatprep.subr.mxu0 0.0
    %1521 = vmatpush1.msra.mxu0 0.0
    %1522 = vmatprep.subr.mxu0 0.0
    %1523 = vmatpush1.msra.mxu0 0.0
    %1524 = vmatprep.subr.mxu0 0.0
    %1525 = vmatpush1.msra.mxu0 0.0
    %1526 = vmatprep.subr.mxu0 0.0
    %1527 = vmatpush1.msra.mxu0 0.0
    %1528 = vmatprep.subr.mxu0 0.0
    %1529 = vmatpush1.msra.mxu0 0.0
    %1530 = vmatprep.subr.mxu0 0.0
    %1531 = vmatpush1.msra.mxu0 0.0
    %1532 = vmatprep.subr.mxu0 0.0
    %1533 = vmatpush1.msra.mxu0 0.0
    %1534 = vmatprep.subr.mxu0 0.0
    %1535 = vmatpush1.msra.mxu0 %v1498
    %1536 = vmatprep.subr.mxu0 0.0
    %1537 = vmatpush1.msra.mxu0 %v1497
    %1538 = vmatprep.subr.mxu0 0.0
    %1539 = vmatpush1.msra.mxu0 %v1496
    %1540 = vmatprep.subr.mxu0 0.0
    %1541 = vmatpush2.msra.mxu0 0.0
    %1542 = vmatprep.subr.mxu0 0.0
    %1543 = vmatpush2.msra.mxu0 0.0
    %1544 = vmatprep.subr.mxu0 0.0
    %1545 = vmatpush2.msra.mxu0 0.0
    %1546 = vmatprep.subr.mxu0 0.0
    %1547 = vmatpush2.msra.mxu0 0.0
    %1548 = vmatprep.subr.mxu0 0.0
    %1549 = vmatpush2.msra.mxu0 0.0
    %1550 = vmatprep.subr.mxu0 0.0
    %1551 = vmatpush2.msra.mxu0 0.0
    %1552 = vmatprep.subr.mxu0 0.0
    %1553 = vmatpush2.msra.mxu0 0.0
    %1554 = vmatprep.subr.mxu0 0.0
    %1555 = vmatpush2.msra.mxu0 0.0
    %1556 = vmatprep.subr.mxu0 0.0
    %1557 = vmatpush2.msra.mxu0 0.0
    %1558 = vmatprep.subr.mxu0 0.0
    %1559 = vmatpush2.msra.mxu0 0.0
    %1560 = vmatprep.subr.mxu0 0.0
    %1561 = vmatpush2.msra.mxu0 0.0
    %1562 = vmatprep.subr.mxu0 0.0
    %1563 = vmatpush2.msra.mxu0 0.0
    %1564 = vmatprep.subr.mxu0 0.0
    %1565 = vmatpush2.msra.mxu0 0.0
    %1566 = vmatprep.subr.mxu0 0.0
    %1567 = vmatpush2.msra.mxu0 0.0
    %1568 = vmatprep.subr.mxu0 0.0
    %1569 = vmatpush2.msra.mxu0 0.0
    %1570 = vmatprep.subr.mxu0 0.0
    %1571 = vmatpush2.msra.mxu0 0.0
    %1572 = vmatprep.mubr.f32.mxu0 0.0
    %1573 = vmatmul.mubr.f32.gmra.mxu0 %v1506
    %v1574 = vpop.f32.mrf.mxu0
    %v1575 = vadd.f32 %v1503, %v1574
    %v1576 = vpop.f32.mrf.mxu0
    %1577 = vdwg.mxu0
    %v1578 = vmax.f32 %v1575, 0.0
    %v1579 = vld [vmem:[#allocation5 + $0x178] sm:$0xff]
    %v1580 = vld [vmem:[#allocation5 + $0x180] sm:$0xff]
    %v1581 = vld [vmem:[#allocation5 + $0x188] sm:$0xff]
    %v1582 = vld [vmem:[#allocation5 + $0x190] sm:$0xff]
    %v1583 = vld [vmem:[#allocation5 + $0x198] sm:$0x1]
    %v1584 = vlaneseq
    %v1585 = vshrl.u32 %v1584, 7
    %v1586 = vsub.s32 0, %v1585
    %v1587 = vrot.slane %v1583, %v1586
    %v1589 = vsel %vm212, %v1578, 0
    %1591 = vmatprep.subr.mxu0 0.0
    %1592 = vmatpush1.msra.mxu0 0.0
    %1593 = vmatprep.subr.mxu0 0.0
    %1594 = vmatpush1.msra.mxu0 0.0
    %1595 = vmatprep.subr.mxu0 0.0
    %1596 = vmatpush1.msra.mxu0 0.0
    %1597 = vmatprep.subr.mxu0 0.0
    %1598 = vmatpush1.msra.mxu0 0.0
    %1599 = vmatprep.subr.mxu0 0.0
    %1600 = vmatpush1.msra.mxu0 0.0
    %1601 = vmatprep.subr.mxu0 0.0
    %1602 = vmatpush1.msra.mxu0 0.0
    %1603 = vmatprep.subr.mxu0 0.0
    %1604 = vmatpush1.msra.mxu0 0.0
    %1605 = vmatprep.subr.mxu0 0.0
    %1606 = vmatpush1.msra.mxu0 0.0
    %1607 = vmatprep.subr.mxu0 0.0
    %1608 = vmatpush1.msra.mxu0 0.0
    %1609 = vmatprep.subr.mxu0 0.0
    %1610 = vmatpush1.msra.mxu0 0.0
    %1611 = vmatprep.subr.mxu0 0.0
    %1612 = vmatpush1.msra.mxu0 0.0
    %1613 = vmatprep.subr.mxu0 0.0
    %1614 = vmatpush1.msra.mxu0 0.0
    %1615 = vmatprep.subr.mxu0 0.0
    %1616 = vmatpush1.msra.mxu0 %v1582
    %1617 = vmatprep.subr.mxu0 0.0
    %1618 = vmatpush1.msra.mxu0 %v1581
    %1619 = vmatprep.subr.mxu0 0.0
    %1620 = vmatpush1.msra.mxu0 %v1580
    %1621 = vmatprep.subr.mxu0 0.0
    %1622 = vmatpush1.msra.mxu0 %v1579
    %1623 = vmatprep.subr.mxu0 0.0
    %1624 = vmatpush2.msra.mxu0 0.0
    %1625 = vmatprep.subr.mxu0 0.0
    %1626 = vmatpush2.msra.mxu0 0.0
    %1627 = vmatprep.subr.mxu0 0.0
    %1628 = vmatpush2.msra.mxu0 0.0
    %1629 = vmatprep.subr.mxu0 0.0
    %1630 = vmatpush2.msra.mxu0 0.0
    %1631 = vmatprep.subr.mxu0 0.0
    %1632 = vmatpush2.msra.mxu0 0.0
    %1633 = vmatprep.subr.mxu0 0.0
    %1634 = vmatpush2.msra.mxu0 0.0
    %1635 = vmatprep.subr.mxu0 0.0
    %1636 = vmatpush2.msra.mxu0 0.0
    %1637 = vmatprep.subr.mxu0 0.0
    %1638 = vmatpush2.msra.mxu0 0.0
    %1639 = vmatprep.subr.mxu0 0.0
    %1640 = vmatpush2.msra.mxu0 0.0
    %1641 = vmatprep.subr.mxu0 0.0
    %1642 = vmatpush2.msra.mxu0 0.0
    %1643 = vmatprep.subr.mxu0 0.0
    %1644 = vmatpush2.msra.mxu0 0.0
    %1645 = vmatprep.subr.mxu0 0.0
    %1646 = vmatpush2.msra.mxu0 0.0
    %1647 = vmatprep.subr.mxu0 0.0
    %1648 = vmatpush2.msra.mxu0 0.0
    %1649 = vmatprep.subr.mxu0 0.0
    %1650 = vmatpush2.msra.mxu0 0.0
    %1651 = vmatprep.subr.mxu0 0.0
    %1652 = vmatpush2.msra.mxu0 0.0
    %1653 = vmatprep.subr.mxu0 0.0
    %1654 = vmatpush2.msra.mxu0 0.0
    %1655 = vmatprep.mubr.f32.mxu0 0.0
    %1656 = vmatmul.mubr.f32.gmra.mxu0 %v1589
    %v1657 = vpop.f32.mrf.mxu0
    %v1658 = vadd.f32 %v1587, %v1657
    %v1659 = vpop.f32.mrf.mxu0
    %1660 = vdwg.mxu0
    %v1661 = vmax.f32 %v1658, 0.0
    %v1662 = vld [vmem:[#allocation5 + $0x1a0] sm:$0xff]
    %v1663 = vld [vmem:[#allocation5 + $0x1a8] sm:$0xff]
    %v1664 = vld [vmem:[#allocation5 + $0x1b0] sm:$0xff]
    %v1665 = vld [vmem:[#allocation5 + $0x1b8] sm:$0xff]
    %v1666 = vld [vmem:[#allocation5 + $0x1c0] sm:$0x1]
    %v1667 = vlaneseq
    %v1668 = vshrl.u32 %v1667, 7
    %v1669 = vsub.s32 0, %v1668
    %v1670 = vrot.slane %v1666, %v1669
    %v1672 = vsel %vm212, %v1661, 0
    %1674 = vmatprep.subr.mxu0 0.0
    %1675 = vmatpush1.msra.mxu0 0.0
    %1676 = vmatprep.subr.mxu0 0.0
    %1677 = vmatpush1.msra.mxu0 0.0
    %1678 = vmatprep.subr.mxu0 0.0
    %1679 = vmatpush1.msra.mxu0 0.0
    %1680 = vmatprep.subr.mxu0 0.0
    %1681 = vmatpush1.msra.mxu0 0.0
    %1682 = vmatprep.subr.mxu0 0.0
    %1683 = vmatpush1.msra.mxu0 0.0
    %1684 = vmatprep.subr.mxu0 0.0
    %1685 = vmatpush1.msra.mxu0 0.0
    %1686 = vmatprep.subr.mxu0 0.0
    %1687 = vmatpush1.msra.mxu0 0.0
    %1688 = vmatprep.subr.mxu0 0.0
    %1689 = vmatpush1.msra.mxu0 0.0
    %1690 = vmatprep.subr.mxu0 0.0
    %1691 = vmatpush1.msra.mxu0 0.0
    %1692 = vmatprep.subr.mxu0 0.0
    %1693 = vmatpush1.msra.mxu0 0.0
    %1694 = vmatprep.subr.mxu0 0.0
    %1695 = vmatpush1.msra.mxu0 0.0
    %1696 = vmatprep.subr.mxu0 0.0
    %1697 = vmatpush1.msra.mxu0 0.0
    %1698 = vmatprep.subr.mxu0 0.0
    %1699 = vmatpush1.msra.mxu0 %v1665
    %1700 = vmatprep.subr.mxu0 0.0
    %1701 = vmatpush1.msra.mxu0 %v1664
    %1702 = vmatprep.subr.mxu0 0.0
    %1703 = vmatpush1.msra.mxu0 %v1663
    %1704 = vmatprep.subr.mxu0 0.0
    %1705 = vmatpush1.msra.mxu0 %v1662
    %1706 = vmatprep.subr.mxu0 0.0
    %1707 = vmatpush2.msra.mxu0 0.0
    %1708 = vmatprep.subr.mxu0 0.0
    %1709 = vmatpush2.msra.mxu0 0.0
    %1710 = vmatprep.subr.mxu0 0.0
    %1711 = vmatpush2.msra.mxu0 0.0
    %1712 = vmatprep.subr.mxu0 0.0
    %1713 = vmatpush2.msra.mxu0 0.0
    %1714 = vmatprep.subr.mxu0 0.0
    %1715 = vmatpush2.msra.mxu0 0.0
    %1716 = vmatprep.subr.mxu0 0.0
    %1717 = vmatpush2.msra.mxu0 0.0
    %1718 = vmatprep.subr.mxu0 0.0
    %1719 = vmatpush2.msra.mxu0 0.0
    %1720 = vmatprep.subr.mxu0 0.0
    %1721 = vmatpush2.msra.mxu0 0.0
    %1722 = vmatprep.subr.mxu0 0.0
    %1723 = vmatpush2.msra.mxu0 0.0
    %1724 = vmatprep.subr.mxu0 0.0
    %1725 = vmatpush2.msra.mxu0 0.0
    %1726 = vmatprep.subr.mxu0 0.0
    %1727 = vmatpush2.msra.mxu0 0.0
    %1728 = vmatprep.subr.mxu0 0.0
    %1729 = vmatpush2.msra.mxu0 0.0
    %1730 = vmatprep.subr.mxu0 0.0
    %1731 = vmatpush2.msra.mxu0 0.0
    %1732 = vmatprep.subr.mxu0 0.0
    %1733 = vmatpush2.msra.mxu0 0.0
    %1734 = vmatprep.subr.mxu0 0.0
    %1735 = vmatpush2.msra.mxu0 0.0
    %1736 = vmatprep.subr.mxu0 0.0
    %1737 = vmatpush2.msra.mxu0 0.0
    %1738 = vmatprep.mubr.f32.mxu0 0.0
    %1739 = vmatmul.mubr.f32.gmra.mxu0 %v1672
    %v1740 = vpop.f32.mrf.mxu0
    %v1741 = vadd.f32 %v1670, %v1740
    %v1742 = vpop.f32.mrf.mxu0
    %1743 = vdwg.mxu0
    %v1744 = vadd.f32 %v1493, %v1741
    %1745 = vst [vmem:[#allocation7] sm:$0x3] %v1744
    // Predicated region
    $region18: #{tpu_custom_call.1} parent=1 // pred_check
      _
    $region19: #{tpu_custom_call.1} parent=1 // pred_check_branch
      %1747 = sbr.rel (0) target = $region21
    $region20: #{tpu_custom_call.1} parent=1 // pred_region
      %s1749 = ssub.s32 32, 32
      %1750 = vsyncadd [#allocation4], %s1749
      %s1752 = sshll.u32 [#allocation7], 4
      %s1753 = int_to_ptr.vmem [resolvable:$true] %s1752
      %1755 = dma.vmem_to_hbm [thread:$0]  %s1753, 32, %s2, [#allocation4]
    $region21: #{tpu_custom_call.1} parent=1 // pred_fallthru
      _
    // Predicated region
    $region22: #{tpu_custom_call.1} parent=1 // pred_check
      _
    $region23: #{tpu_custom_call.1} parent=1 // pred_check_branch
      %1757 = sbr.rel (0) target = $region25
    $region24: #{tpu_custom_call.1} parent=1 // pred_region
      %1758 = dma.done [#allocation4], 32
    $region25: #{tpu_custom_call.1} parent=1 // pred_fallthru
      _
    %1759 = vsyncpa [#allocation3], 1
    %1760 = vsyncpa [#allocation6], 1
    %1761 = vsyncpa [#allocation4], 1

</llo_original>
